<compile_context>
chip_gen: v6e
topology: v6e:2x2x1
jax: 0.10.0
libtpu: 0.0.40
codegen_flags: <defaults>
</compile_context>

<pallas_src>
import functools

import jax
import jax.numpy as jnp
from jax import lax
from jax.experimental import pallas as pl
from jax.experimental.pallas import tpu as pltpu

_BN_EPS = 1e-5


def _round_up(v, m):
    return ((v + m - 1) // m) * m


def _full_spec(shape):
    # Whole-array block (grid = ()), resident in VMEM for the single kernel invocation.
    return pl.BlockSpec(shape, lambda: (0,) * len(shape))


def _vmem_capacity_bytes():
    """Generation-aware VMEM capacity (v5e/v6e: 128 MiB, v7x: 64 MiB); conservative fallback."""
    try:
        info = pltpu.get_tpu_info()
        cap = getattr(info, "vmem_capacity_bytes", None)
        if cap:
            return int(cap)
    except Exception:
        pass
    return 64 << 20


def _fused_gsage_bn_kernel(a_ref, x_ref,
                           ws1_ref, wn1_ref, b1_ref, g1_ref, be1_ref,
                           ws2_ref, wn2_ref, b2_ref, g2_ref, be2_ref,
                           ws3_ref, wn3_ref, b3_ref,
                           o_ref, *, act, n_valid):
    """conv1+BN1+act -> conv2+BN2+act -> conv3, fused; A resident in VMEM, DMA'd once."""
    n_pad = a_ref.shape[0]
    # (1, N_pad) valid-node mask row: used as a skinny MXU reduction vector for BN stats.
    col = lax.broadcasted_iota(jnp.int32, (1, n_pad), 1)
    mask_row = (col < n_valid).astype(jnp.float32)
    inv_n = jnp.float32(1.0 / n_valid)

    a = a_ref[...]                                      # bf16 (n_pad, n_pad), zero-padded

    def sage(h_bf16, ws_ref, wn_ref, b_ref):
        fin_p, fout_p = wn_ref.shape
        if fout_p < fin_p:
            # (A @ h) @ Wn == A @ (h @ Wn): project first so the dominant N^2 matmul
            # runs over the smaller feature dim.
            hp = jnp.dot(h_bf16, wn_ref[...], preferred_element_type=jnp.float32)
            neigh = jnp.dot(a, hp.astype(jnp.bfloat16), preferred_element_type=jnp.float32)
        else:
            agg = jnp.dot(a, h_bf16, preferred_element_type=jnp.float32)
            neigh = jnp.dot(agg.astype(jnp.bfloat16), wn_ref[...],
                            preferred_element_type=jnp.float32)
        self_p = jnp.dot(h_bf16, ws_ref[...], preferred_element_type=jnp.float32)
        return self_p + neigh + b_ref[...]

    def bn_act(h, g_ref, be_ref):
        # Single-pass BatchNorm1d over the REAL nodes only (biased variance, batch stats).
        # Column sums via skinny (1,N)@(N,F) MXU matmuls against the mask row.
        s1 = jnp.dot(mask_row, h, preferred_element_type=jnp.float32)
        s2 = jnp.dot(mask_row, h * h, preferred_element_type=jnp.float32)
        mu = s1 * inv_n
        var = jnp.maximum(s2 * inv_n - mu * mu, 0.0)     # guard fp cancellation
        scale = g_ref[...] * lax.rsqrt(var + _BN_EPS)
        shift = be_ref[...] - mu * scale
        h_n = h * scale + shift                          # one fused VPU pass
        if act == "elu":
            return jnp.where(h_n > 0.0, h_n, jnp.exp(jnp.minimum(h_n, 0.0)) - 1.0)
        return jnp.maximum(h_n, 0.0)

    # Padded rows/cols of A are zero, so garbage in padded rows of intermediates never
    # propagates through the aggregation; BN stats exclude them via mask_row; the final
    # [:n, :f_out] slice in the wrapper drops them.
    h1 = bn_act(sage(x_ref[...], ws1_ref, wn1_ref, b1_ref), g1_ref, be1_ref)
    # dropout = identity (deterministic forward)
    h2 = bn_act(sage(h1.astype(jnp.bfloat16), ws2_ref, wn2_ref, b2_ref), g2_ref, be2_ref)
    # layer 3: plain SAGEConv, no BN / activation
    o_ref[...] = sage(h2.astype(jnp.bfloat16), ws3_ref, wn3_ref, b3_ref)


def _pad2(m, r, c):
    return jnp.pad(m, ((0, r - m.shape[0]), (0, c - m.shape[1])))


def _padrow(v, c):
    return jnp.pad(v.reshape(1, -1), ((0, 0), (0, c - v.shape[0])))


def prepare_weights(params):
    """Pad / cast model weights once per model (hoisted out of the per-call path)."""
    f_in, hdn = params["w_self1"].shape
    f_out = params["w_self3"].shape[1]
    fi_p = _round_up(f_in, 128)
    h_p = _round_up(hdn, 128)
    fo_p = _round_up(f_out, 128)
    prep = {"dims": (f_in, hdn, f_out, fi_p, h_p, fo_p)}
    layer_dims = {1: (fi_p, h_p), 2: (h_p, h_p), 3: (h_p, fo_p)}
    for i, (kin, kout) in layer_dims.items():
        prep[f"ws{i}"] = _pad2(params[f"w_self{i}"], kin, kout).astype(jnp.bfloat16)
        prep[f"wn{i}"] = _pad2(params[f"w_neigh{i}"], kin, kout).astype(jnp.bfloat16)
        prep[f"b{i}"] = _padrow(params[f"b{i}"], kout)
    for i in (1, 2):
        prep[f"g{i}"] = _padrow(params[f"bn{i}_gamma"], h_p)
        prep[f"be{i}"] = _padrow(params[f"bn{i}_beta"], h_p)
    return prep


def three_layer_graphsage_bn(a_norm, x, prep, activation="elu"):
    n = x.shape[0]
    f_in, hdn, f_out, fi_p, h_p, fo_p = prep["dims"]
    assert x.shape[1] == f_in

    # Lane-dense layout: N padded to 128 (A's last dim is both the lane axis of the resident
    # tile and the K dim of the aggregation matmul).
    n_p = _round_up(max(n, 1), 128)

    a_p = _pad2(a_norm, n_p, n_p).astype(jnp.bfloat16)
    x_p = _pad2(x, n_p, fi_p).astype(jnp.bfloat16)

    operands = (a_p, x_p,
                prep["ws1"], prep["wn1"], prep["b1"], prep["g1"], prep["be1"],
                prep["ws2"], prep["wn2"], prep["b2"], prep["g2"], prep["be2"],
                prep["ws3"], prep["wn3"], prep["b3"])

    # Advisory cost estimate.
    def layer_flops(fin_p, fout_p):
        return 2 * n_p * n_p * min(fin_p, fout_p) + 4 * n_p * fin_p * fout_p

    flops = (layer_flops(fi_p, h_p) + layer_flops(h_p, h_p) + layer_flops(h_p, fo_p)
             + 8 * n_p * h_p)                     # + skinny BN-stat matmuls
    out_bytes = n_p * fo_p * 4
    op_bytes = sum(int(op.size) * op.dtype.itemsize for op in operands)
    cost = pl.CostEstimate(flops=int(flops),
                           transcendentals=int(2 * n_p * h_p),
                           bytes_accessed=int(op_bytes + out_bytes))

    # VMEM budget: operands + output + a few f32 intermediates, 2x headroom for Mosaic
    # scratch, capped at 85% of the queried per-core VMEM (generation-aware).
    interm_bytes = 6 * n_p * max(fi_p, h_p, fo_p) * 4
    vmem_need = op_bytes + out_bytes + interm_bytes
    cap = _vmem_capacity_bytes()
    vmem_limit = int(min(max(2 * vmem_need, 32 << 20), int(cap * 0.85)))

    kern = functools.partial(_fused_gsage_bn_kernel, act=activation, n_valid=n)
    out_p = pl.pallas_call(
        kern,
        out_shape=jax.ShapeDtypeStruct((n_p, fo_p), jnp.float32),
        in_specs=[_full_spec(op.shape) for op in operands],
        out_specs=_full_spec((n_p, fo_p)),
        compiler_params=pltpu.CompilerParams(vmem_limit_bytes=vmem_limit),
        cost_estimate=cost,
    )(*operands)

    return out_p[:n, :f_out]


def init_params(key, in_features, hidden_features, out_features):
    """Uniform(-1/sqrt(fan_in), 1/sqrt(fan_in)) init per SAGEConv; BN gamma=1 / beta=0."""
    dims = [(in_features, hidden_features),
            (hidden_features, hidden_features),
            (hidden_features, out_features)]
    params = {}
    for i, (fin, fout) in enumerate(dims, start=1):
        key, k_ws, k_wn, k_b = jax.random.split(key, 4)
        bound = 1.0 / jnp.sqrt(jnp.float32(fin))
        params[f"w_self{i}"] = jax.random.uniform(k_ws, (fin, fout), jnp.float32, -bound, bound)
        params[f"w_neigh{i}"] = jax.random.uniform(k_wn, (fin, fout), jnp.float32, -bound, bound)
        params[f"b{i}"] = jax.random.uniform(k_b, (fout,), jnp.float32, -bound, bound)
    params["bn1_gamma"] = jnp.ones((hidden_features,), jnp.float32)
    params["bn1_beta"] = jnp.zeros((hidden_features,), jnp.float32)
    params["bn2_gamma"] = jnp.ones((hidden_features,), jnp.float32)
    params["bn2_beta"] = jnp.zeros((hidden_features,), jnp.float32)
    return params


def build_graph(key, n_nodes):
    """Random directed graph; return row-normalized (by in-degree) dense adjacency."""
    adj = jax.random.bernoulli(key, p=0.3, shape=(n_nodes, n_nodes)).astype(jnp.float32)
    adj = adj * (1.0 - jnp.eye(n_nodes, dtype=jnp.float32))        # no self loops
    deg = jnp.sum(adj, axis=1, keepdims=True)
    a_norm = jnp.where(deg > 0, adj / jnp.maximum(deg, 1.0), 0.0)  # mean of 0 neighbors -> 0
    return a_norm


if __name__ == "__main__":
    N_NODES = 16
    IN_FEATURES = 8
    HIDDEN_FEATURES = 32
    OUT_FEATURES = 16

    key = jax.random.PRNGKey(0)
    k_graph, k_feat, k_params = jax.random.split(key, 3)

    a_norm = build_graph(k_graph, N_NODES)
    x = jax.random.normal(k_feat, (N_NODES, IN_FEATURES), jnp.float32)
    params = init_params(k_params, IN_FEATURES, HIDDEN_FEATURES, OUT_FEATURES)
    prep = prepare_weights(params)   # padding / bf16 casts hoisted out of the per-call path

    out = three_layer_graphsage_bn(a_norm, x, prep, activation="elu")
    out = jax.block_until_ready(out)

    assert out.shape == (N_NODES, OUT_FEATURES), out.shape
    assert bool(jnp.all(jnp.isfinite(out)))
    print("KERNEL_OK")
</pallas_src>

<mosaic_0001>
module attributes {stable_mosaic.version = 11 : i64} {
  func.func @_fused_gsage_bn_kernel(%arg0: memref<128x128xbf16, #tpu.memory_space<vmem>>, %arg1: memref<128x128xbf16, #tpu.memory_space<vmem>>, %arg2: memref<128x128xbf16, #tpu.memory_space<vmem>>, %arg3: memref<128x128xbf16, #tpu.memory_space<vmem>>, %arg4: memref<1x128xf32, #tpu.memory_space<vmem>>, %arg5: memref<1x128xf32, #tpu.memory_space<vmem>>, %arg6: memref<1x128xf32, #tpu.memory_space<vmem>>, %arg7: memref<128x128xbf16, #tpu.memory_space<vmem>>, %arg8: memref<128x128xbf16, #tpu.memory_space<vmem>>, %arg9: memref<1x128xf32, #tpu.memory_space<vmem>>, %arg10: memref<1x128xf32, #tpu.memory_space<vmem>>, %arg11: memref<1x128xf32, #tpu.memory_space<vmem>>, %arg12: memref<128x128xbf16, #tpu.memory_space<vmem>>, %arg13: memref<128x128xbf16, #tpu.memory_space<vmem>>, %arg14: memref<1x128xf32, #tpu.memory_space<vmem>>, %arg15: memref<128x128xf32, #tpu.memory_space<vmem>>) attributes {dimension_semantics = [], scalar_prefetch = 0 : i64, scratch_operands = 0 : i64, tpu.core_type = #tpu.core_type<tc>} {
    %0 = tpu.iota {dimensions = array<i32: 1>} : vector<1x128xi32>
    %c16_i32 = arith.constant 16 : i32
    %1 = vector.broadcast %c16_i32 : i32 to vector<1x128xi32>
    %2 = arith.cmpi slt, %0, %1 : vector<1x128xi32>
    %3 = arith.extui %2 : vector<1x128xi1> to vector<1x128xi32>
    %4 = arith.sitofp %3 : vector<1x128xi32> to vector<1x128xf32>
    %c0 = arith.constant 0 : index
    %c0_0 = arith.constant 0 : index
    %5 = vector.load %arg0[%c0, %c0_0] : memref<128x128xbf16, #tpu.memory_space<vmem>>, vector<128x128xbf16>
    %c0_1 = arith.constant 0 : index
    %c0_2 = arith.constant 0 : index
    %6 = vector.load %arg1[%c0_1, %c0_2] : memref<128x128xbf16, #tpu.memory_space<vmem>>, vector<128x128xbf16>
    %cst = arith.constant dense<0.000000e+00> : vector<128x128xf32>
    %7 = tpu.matmul %5, %6, %cst {dimension_numbers = #tpu.dot_dimension_numbers<[1], [0], [0], [1], [0, 0, 1, 1], [], []>} : vector<128x128xbf16>, vector<128x128xbf16>, vector<128x128xf32> -> vector<128x128xf32>
    %8 = arith.truncf %7 : vector<128x128xf32> to vector<128x128xbf16>
    %c0_3 = arith.constant 0 : index
    %c0_4 = arith.constant 0 : index
    %9 = vector.load %arg3[%c0_3, %c0_4] : memref<128x128xbf16, #tpu.memory_space<vmem>>, vector<128x128xbf16>
    %cst_5 = arith.constant dense<0.000000e+00> : vector<128x128xf32>
    %10 = tpu.matmul %8, %9, %cst_5 {dimension_numbers = #tpu.dot_dimension_numbers<[1], [0], [0], [1], [0, 0, 1, 1], [], []>} : vector<128x128xbf16>, vector<128x128xbf16>, vector<128x128xf32> -> vector<128x128xf32>
    %c0_6 = arith.constant 0 : index
    %c0_7 = arith.constant 0 : index
    %11 = vector.load %arg2[%c0_6, %c0_7] : memref<128x128xbf16, #tpu.memory_space<vmem>>, vector<128x128xbf16>
    %cst_8 = arith.constant dense<0.000000e+00> : vector<128x128xf32>
    %12 = tpu.matmul %6, %11, %cst_8 {dimension_numbers = #tpu.dot_dimension_numbers<[1], [0], [0], [1], [0, 0, 1, 1], [], []>} : vector<128x128xbf16>, vector<128x128xbf16>, vector<128x128xf32> -> vector<128x128xf32>
    %13 = arith.addf %12, %10 : vector<128x128xf32>
    %c0_9 = arith.constant 0 : index
    %c0_10 = arith.constant 0 : index
    %14 = vector.load %arg4[%c0_9, %c0_10] : memref<1x128xf32, #tpu.memory_space<vmem>>, vector<1x128xf32>
    %15 = vector.broadcast %14 : vector<1x128xf32> to vector<128x128xf32>
    %16 = arith.addf %13, %15 : vector<128x128xf32>
    %cst_11 = arith.constant dense<0.000000e+00> : vector<1x128xf32>
    %17 = tpu.matmul %4, %16, %cst_11 {dimension_numbers = #tpu.dot_dimension_numbers<[1], [0], [0], [1], [0, 0, 1, 1], [], []>} : vector<1x128xf32>, vector<128x128xf32>, vector<1x128xf32> -> vector<1x128xf32>
    %18 = arith.mulf %16, %16 : vector<128x128xf32>
    %cst_12 = arith.constant dense<0.000000e+00> : vector<1x128xf32>
    %19 = tpu.matmul %4, %18, %cst_12 {dimension_numbers = #tpu.dot_dimension_numbers<[1], [0], [0], [1], [0, 0, 1, 1], [], []>} : vector<1x128xf32>, vector<128x128xf32>, vector<1x128xf32> -> vector<1x128xf32>
    %cst_13 = arith.constant 6.250000e-02 : f32
    %20 = vector.broadcast %cst_13 : f32 to vector<1x128xf32>
    %21 = arith.mulf %17, %20 : vector<1x128xf32>
    %cst_14 = arith.constant 6.250000e-02 : f32
    %22 = vector.broadcast %cst_14 : f32 to vector<1x128xf32>
    %23 = arith.mulf %19, %22 : vector<1x128xf32>
    %24 = arith.mulf %21, %21 : vector<1x128xf32>
    %25 = arith.subf %23, %24 : vector<1x128xf32>
    %cst_15 = arith.constant 0.000000e+00 : f32
    %26 = vector.broadcast %cst_15 : f32 to vector<1x128xf32>
    %27 = arith.maximumf %25, %26 : vector<1x128xf32>
    %c0_16 = arith.constant 0 : index
    %c0_17 = arith.constant 0 : index
    %28 = vector.load %arg5[%c0_16, %c0_17] : memref<1x128xf32, #tpu.memory_space<vmem>>, vector<1x128xf32>
    %cst_18 = arith.constant 9.99999974E-6 : f32
    %29 = vector.broadcast %cst_18 : f32 to vector<1x128xf32>
    %30 = arith.addf %27, %29 : vector<1x128xf32>
    %31 = math.rsqrt %30 : vector<1x128xf32>
    %32 = arith.mulf %28, %31 : vector<1x128xf32>
    %c0_19 = arith.constant 0 : index
    %c0_20 = arith.constant 0 : index
    %33 = vector.load %arg6[%c0_19, %c0_20] : memref<1x128xf32, #tpu.memory_space<vmem>>, vector<1x128xf32>
    %34 = arith.mulf %21, %32 : vector<1x128xf32>
    %35 = arith.subf %33, %34 : vector<1x128xf32>
    %36 = vector.broadcast %32 : vector<1x128xf32> to vector<128x128xf32>
    %37 = arith.mulf %16, %36 : vector<128x128xf32>
    %38 = vector.broadcast %35 : vector<1x128xf32> to vector<128x128xf32>
    %39 = arith.addf %37, %38 : vector<128x128xf32>
    %cst_21 = arith.constant 0.000000e+00 : f32
    %40 = vector.broadcast %cst_21 : f32 to vector<128x128xf32>
    %41 = arith.cmpf ogt, %39, %40 : vector<128x128xf32>
    %cst_22 = arith.constant 0.000000e+00 : f32
    %42 = vector.broadcast %cst_22 : f32 to vector<128x128xf32>
    %43 = arith.minimumf %39, %42 : vector<128x128xf32>
    %44 = math.exp %43 : vector<128x128xf32>
    %cst_23 = arith.constant 1.000000e+00 : f32
    %45 = vector.broadcast %cst_23 : f32 to vector<128x128xf32>
    %46 = arith.subf %44, %45 : vector<128x128xf32>
    %47 = arith.select %41, %39, %46 : vector<128x128xi1>, vector<128x128xf32>
    %48 = arith.truncf %47 : vector<128x128xf32> to vector<128x128xbf16>
    %cst_24 = arith.constant dense<0.000000e+00> : vector<128x128xf32>
    %49 = tpu.matmul %5, %48, %cst_24 {dimension_numbers = #tpu.dot_dimension_numbers<[1], [0], [0], [1], [0, 0, 1, 1], [], []>} : vector<128x128xbf16>, vector<128x128xbf16>, vector<128x128xf32> -> vector<128x128xf32>
    %50 = arith.truncf %49 : vector<128x128xf32> to vector<128x128xbf16>
    %c0_25 = arith.constant 0 : index
    %c0_26 = arith.constant 0 : index
    %51 = vector.load %arg8[%c0_25, %c0_26] : memref<128x128xbf16, #tpu.memory_space<vmem>>, vector<128x128xbf16>
    %cst_27 = arith.constant dense<0.000000e+00> : vector<128x128xf32>
    %52 = tpu.matmul %50, %51, %cst_27 {dimension_numbers = #tpu.dot_dimension_numbers<[1], [0], [0], [1], [0, 0, 1, 1], [], []>} : vector<128x128xbf16>, vector<128x128xbf16>, vector<128x128xf32> -> vector<128x128xf32>
    %c0_28 = arith.constant 0 : index
    %c0_29 = arith.constant 0 : index
    %53 = vector.load %arg7[%c0_28, %c0_29] : memref<128x128xbf16, #tpu.memory_space<vmem>>, vector<128x128xbf16>
    %cst_30 = arith.constant dense<0.000000e+00> : vector<128x128xf32>
    %54 = tpu.matmul %48, %53, %cst_30 {dimension_numbers = #tpu.dot_dimension_numbers<[1], [0], [0], [1], [0, 0, 1, 1], [], []>} : vector<128x128xbf16>, vector<128x128xbf16>, vector<128x128xf32> -> vector<128x128xf32>
    %55 = arith.addf %54, %52 : vector<128x128xf32>
    %c0_31 = arith.constant 0 : index
    %c0_32 = arith.constant 0 : index
    %56 = vector.load %arg9[%c0_31, %c0_32] : memref<1x128xf32, #tpu.memory_space<vmem>>, vector<1x128xf32>
    %57 = vector.broadcast %56 : vector<1x128xf32> to vector<128x128xf32>
    %58 = arith.addf %55, %57 : vector<128x128xf32>
    %cst_33 = arith.constant dense<0.000000e+00> : vector<1x128xf32>
    %59 = tpu.matmul %4, %58, %cst_33 {dimension_numbers = #tpu.dot_dimension_numbers<[1], [0], [0], [1], [0, 0, 1, 1], [], []>} : vector<1x128xf32>, vector<128x128xf32>, vector<1x128xf32> -> vector<1x128xf32>
    %60 = arith.mulf %58, %58 : vector<128x128xf32>
    %cst_34 = arith.constant dense<0.000000e+00> : vector<1x128xf32>
    %61 = tpu.matmul %4, %60, %cst_34 {dimension_numbers = #tpu.dot_dimension_numbers<[1], [0], [0], [1], [0, 0, 1, 1], [], []>} : vector<1x128xf32>, vector<128x128xf32>, vector<1x128xf32> -> vector<1x128xf32>
    %cst_35 = arith.constant 6.250000e-02 : f32
    %62 = vector.broadcast %cst_35 : f32 to vector<1x128xf32>
    %63 = arith.mulf %59, %62 : vector<1x128xf32>
    %cst_36 = arith.constant 6.250000e-02 : f32
    %64 = vector.broadcast %cst_36 : f32 to vector<1x128xf32>
    %65 = arith.mulf %61, %64 : vector<1x128xf32>
    %66 = arith.mulf %63, %63 : vector<1x128xf32>
    %67 = arith.subf %65, %66 : vector<1x128xf32>
    %cst_37 = arith.constant 0.000000e+00 : f32
    %68 = vector.broadcast %cst_37 : f32 to vector<1x128xf32>
    %69 = arith.maximumf %67, %68 : vector<1x128xf32>
    %c0_38 = arith.constant 0 : index
    %c0_39 = arith.constant 0 : index
    %70 = vector.load %arg10[%c0_38, %c0_39] : memref<1x128xf32, #tpu.memory_space<vmem>>, vector<1x128xf32>
    %cst_40 = arith.constant 9.99999974E-6 : f32
    %71 = vector.broadcast %cst_40 : f32 to vector<1x128xf32>
    %72 = arith.addf %69, %71 : vector<1x128xf32>
    %73 = math.rsqrt %72 : vector<1x128xf32>
    %74 = arith.mulf %70, %73 : vector<1x128xf32>
    %c0_41 = arith.constant 0 : index
    %c0_42 = arith.constant 0 : index
    %75 = vector.load %arg11[%c0_41, %c0_42] : memref<1x128xf32, #tpu.memory_space<vmem>>, vector<1x128xf32>
    %76 = arith.mulf %63, %74 : vector<1x128xf32>
    %77 = arith.subf %75, %76 : vector<1x128xf32>
    %78 = vector.broadcast %74 : vector<1x128xf32> to vector<128x128xf32>
    %79 = arith.mulf %58, %78 : vector<128x128xf32>
    %80 = vector.broadcast %77 : vector<1x128xf32> to vector<128x128xf32>
    %81 = arith.addf %79, %80 : vector<128x128xf32>
    %cst_43 = arith.constant 0.000000e+00 : f32
    %82 = vector.broadcast %cst_43 : f32 to vector<128x128xf32>
    %83 = arith.cmpf ogt, %81, %82 : vector<128x128xf32>
    %cst_44 = arith.constant 0.000000e+00 : f32
    %84 = vector.broadcast %cst_44 : f32 to vector<128x128xf32>
    %85 = arith.minimumf %81, %84 : vector<128x128xf32>
    %86 = math.exp %85 : vector<128x128xf32>
    %cst_45 = arith.constant 1.000000e+00 : f32
    %87 = vector.broadcast %cst_45 : f32 to vector<128x128xf32>
    %88 = arith.subf %86, %87 : vector<128x128xf32>
    %89 = arith.select %83, %81, %88 : vector<128x128xi1>, vector<128x128xf32>
    %90 = arith.truncf %89 : vector<128x128xf32> to vector<128x128xbf16>
    %cst_46 = arith.constant dense<0.000000e+00> : vector<128x128xf32>
    %91 = tpu.matmul %5, %90, %cst_46 {dimension_numbers = #tpu.dot_dimension_numbers<[1], [0], [0], [1], [0, 0, 1, 1], [], []>} : vector<128x128xbf16>, vector<128x128xbf16>, vector<128x128xf32> -> vector<128x128xf32>
    %92 = arith.truncf %91 : vector<128x128xf32> to vector<128x128xbf16>
    %c0_47 = arith.constant 0 : index
    %c0_48 = arith.constant 0 : index
    %93 = vector.load %arg13[%c0_47, %c0_48] : memref<128x128xbf16, #tpu.memory_space<vmem>>, vector<128x128xbf16>
    %cst_49 = arith.constant dense<0.000000e+00> : vector<128x128xf32>
    %94 = tpu.matmul %92, %93, %cst_49 {dimension_numbers = #tpu.dot_dimension_numbers<[1], [0], [0], [1], [0, 0, 1, 1], [], []>} : vector<128x128xbf16>, vector<128x128xbf16>, vector<128x128xf32> -> vector<128x128xf32>
    %c0_50 = arith.constant 0 : index
    %c0_51 = arith.constant 0 : index
    %95 = vector.load %arg12[%c0_50, %c0_51] : memref<128x128xbf16, #tpu.memory_space<vmem>>, vector<128x128xbf16>
    %cst_52 = arith.constant dense<0.000000e+00> : vector<128x128xf32>
    %96 = tpu.matmul %90, %95, %cst_52 {dimension_numbers = #tpu.dot_dimension_numbers<[1], [0], [0], [1], [0, 0, 1, 1], [], []>} : vector<128x128xbf16>, vector<128x128xbf16>, vector<128x128xf32> -> vector<128x128xf32>
    %97 = arith.addf %96, %94 : vector<128x128xf32>
    %c0_53 = arith.constant 0 : index
    %c0_54 = arith.constant 0 : index
    %98 = vector.load %arg14[%c0_53, %c0_54] : memref<1x128xf32, #tpu.memory_space<vmem>>, vector<1x128xf32>
    %99 = vector.broadcast %98 : vector<1x128xf32> to vector<128x128xf32>
    %100 = arith.addf %97, %99 : vector<128x128xf32>
    %c0_55 = arith.constant 0 : index
    %c0_56 = arith.constant 0 : index
    %101 = vector.load %arg15[%c0_55, %c0_56] : memref<128x128xf32, #tpu.memory_space<vmem>>, vector<128x128xf32>
    tpu.vector_store %arg15[%c0_55, %c0_56], %100 {strides = array<i32>} : memref<128x128xf32, #tpu.memory_space<vmem>>, vector<128x128xf32>,
    return
  }
}

</mosaic_0001>

<llo_original>
// kernel: tpu_custom_call.1
$region0: #{tpu_custom_call.1}
  #allocation0 [shape = 'u32[]', space=smem, size = 0x4, offset = 0x4, fixed_abs, tag = 'smem constant byte address 0x4 - core index']
  #allocation1 [shape = 'u32[144,128]{1,0:T(1,128)}', space=vmem, size = 0x12000, scoped, tag = 'internal scratch']
  %s0 = inlined_call_operand.hbm [shape: bf16[128,128], index: 0, kind: input, shape index: {}]
  %s1 = inlined_call_operand.hbm [shape: bf16[128,128], index: 1, kind: input, shape index: {}]
  %s2 = inlined_call_operand.hbm [shape: bf16[128,128], index: 2, kind: input, shape index: {}]
  %s3 = inlined_call_operand.hbm [shape: bf16[128,128], index: 3, kind: input, shape index: {}]
  %s4 = inlined_call_operand.vmem [shape: f32[1,128], index: 4, kind: input, shape index: {}]
  %s5 = inlined_call_operand.vmem [shape: f32[1,128], index: 5, kind: input, shape index: {}]
  %s6 = inlined_call_operand.vmem [shape: f32[1,128], index: 6, kind: input, shape index: {}]
  %s7 = inlined_call_operand.hbm [shape: bf16[128,128], index: 7, kind: input, shape index: {}]
  %s8 = inlined_call_operand.hbm [shape: bf16[128,128], index: 8, kind: input, shape index: {}]
  %s9 = inlined_call_operand.vmem [shape: f32[1,128], index: 9, kind: input, shape index: {}]
  %s10 = inlined_call_operand.vmem [shape: f32[1,128], index: 10, kind: input, shape index: {}]
  %s11 = inlined_call_operand.vmem [shape: f32[1,128], index: 11, kind: input, shape index: {}]
  %s12 = inlined_call_operand.hbm [shape: bf16[128,128], index: 12, kind: input, shape index: {}]
  %s13 = inlined_call_operand.hbm [shape: bf16[128,128], index: 13, kind: input, shape index: {}]
  %s14 = inlined_call_operand.vmem [shape: f32[1,128], index: 14, kind: input, shape index: {}]
  %s15 = inlined_call_operand.hbm [shape: f32[128,128], index: 15, kind: output, shape index: {}]
  %s16 = sld [smem:[#allocation0]]
  $region102: #{tpu_custom_call.1} parent=0
    _
  %s18 = ssub.s32 1, %s16
  %s19 = scalar_select 0, %s18, %s16
  $region1: #{tpu_custom_call.1} parent=0
    #allocation2 [shape = 'u8[32768]{0}', space=vmem, size = 0x8000, scoped, tag = 'input window, operand 0, single buffered']
    #allocation3 [shape = 's32[1]{0}', space=sflag, size = 0x4, scoped, tag = 'scoped memory for tpu_custom_call.1']
    #allocation4 [shape = 's32[1]{0}', space=sflag, size = 0x4, scoped, tag = 'scoped memory for tpu_custom_call.1']
    #allocation5 [shape = 'u8[32768]{0}', space=vmem, size = 0x8000, scoped, tag = 'input window, operand 1, single buffered']
    #allocation6 [shape = 's32[1]{0}', space=sflag, size = 0x4, scoped, tag = 'scoped memory for tpu_custom_call.1']
    #allocation7 [shape = 'u8[32768]{0}', space=vmem, size = 0x8000, scoped, tag = 'input window, operand 2, single buffered']
    #allocation8 [shape = 'u8[32768]{0}', space=vmem, size = 0x8000, scoped, tag = 'input window, operand 3, single buffered']
    #allocation9 [shape = 's32[1]{0}', space=sflag, size = 0x4, scoped, tag = 'scoped memory for tpu_custom_call.1']
    #allocation10 [shape = 'u8[32768]{0}', space=vmem, size = 0x8000, scoped, tag = 'input window, operand 7, single buffered']
    #allocation11 [shape = 'u8[32768]{0}', space=vmem, size = 0x8000, scoped, tag = 'input window, operand 8, single buffered']
    #allocation12 [shape = 's32[1]{0}', space=sflag, size = 0x4, scoped, tag = 'scoped memory for tpu_custom_call.1']
    #allocation13 [shape = 'u8[32768]{0}', space=vmem, size = 0x8000, scoped, tag = 'input window, operand 12, single buffered']
    #allocation14 [shape = 'u8[32768]{0}', space=vmem, size = 0x8000, scoped, tag = 'input window, operand 13, single buffered']
    #allocation15 [shape = 's32[1]{0}', space=sflag, size = 0x4, scoped, tag = 'scoped memory for tpu_custom_call.1']
    #allocation16 [shape = 'u8[65536]{0}', space=vmem, size = 0x10000, scoped, tag = 'output window, operand 0, single buffered']
    %20 = vsyncpa [#allocation3], 0
    %21 = vsyncpa [#allocation6], 0
    %22 = vsyncpa [#allocation9], 0
    %23 = vsyncpa [#allocation12], 0
    %24 = vsyncpa [#allocation15], 0
    %25 = vsyncpa [#allocation4], 0
    // Predicated region
    $region2: #{tpu_custom_call.1} parent=1 // pred_check
      _
    $region3: #{tpu_custom_call.1} parent=1 // pred_check_branch
      %27 = sbr.rel (0) target = $region5
    $region4: #{tpu_custom_call.1} parent=1 // pred_region
      %s29 = ssub.s32 1024, 1024
      %30 = vsyncadd [#allocation3], %s29
      %s31 = sshll.u32 [#allocation2], 4
      %s32 = int_to_ptr.vmem [resolvable:$true] %s31
      %37 = dma.hbm_to_vmem [thread:$0]  %s0, 1024, %s32, [#allocation3], 64, 64, 4
    $region5: #{tpu_custom_call.1} parent=1 // pred_fallthru
      _
    // Predicated region
    $region6: #{tpu_custom_call.1} parent=1 // pred_check
      _
    $region7: #{tpu_custom_call.1} parent=1 // pred_check_branch
      %39 = sbr.rel (0) target = $region9
    $region8: #{tpu_custom_call.1} parent=1 // pred_region
      %s41 = ssub.s32 1024, 1024
      %42 = vsyncadd [#allocation6], %s41
      %s43 = sshll.u32 [#allocation5], 4
      %s44 = int_to_ptr.vmem [resolvable:$true] %s43
      %49 = dma.hbm_to_vmem [thread:$0]  %s1, 1024, %s44, [#allocation6], 64, 64, 4
    $region9: #{tpu_custom_call.1} parent=1 // pred_fallthru
      _
    // Predicated region
    $region10: #{tpu_custom_call.1} parent=1 // pred_check
      _
    $region11: #{tpu_custom_call.1} parent=1 // pred_check_branch
      %51 = sbr.rel (0) target = $region13
    $region12: #{tpu_custom_call.1} parent=1 // pred_region
      %s53 = ssub.s32 1024, 1024
      %54 = vsyncadd [#allocation6], %s53
      %s55 = sshll.u32 [#allocation7], 4
      %s56 = int_to_ptr.vmem [resolvable:$true] %s55
      %61 = dma.hbm_to_vmem [thread:$0]  %s2, 1024, %s56, [#allocation6], 64, 64, 4
    $region13: #{tpu_custom_call.1} parent=1 // pred_fallthru
      _
    // Predicated region
    $region14: #{tpu_custom_call.1} parent=1 // pred_check
      _
    $region15: #{tpu_custom_call.1} parent=1 // pred_check_branch
      %63 = sbr.rel (0) target = $region17
    $region16: #{tpu_custom_call.1} parent=1 // pred_region
      %s65 = ssub.s32 1024, 1024
      %66 = vsyncadd [#allocation9], %s65
      %s67 = sshll.u32 [#allocation8], 4
      %s68 = int_to_ptr.vmem [resolvable:$true] %s67
      %73 = dma.hbm_to_vmem [thread:$0]  %s3, 1024, %s68, [#allocation9], 64, 64, 4
    $region17: #{tpu_custom_call.1} parent=1 // pred_fallthru
      _
    // Predicated region
    $region18: #{tpu_custom_call.1} parent=1 // pred_check
      _
    $region19: #{tpu_custom_call.1} parent=1 // pred_check_branch
      %75 = sbr.rel (0) target = $region21
    $region20: #{tpu_custom_call.1} parent=1 // pred_region
      _
    $region21: #{tpu_custom_call.1} parent=1 // pred_fallthru
      _
    // Predicated region
    $region22: #{tpu_custom_call.1} parent=1 // pred_check
      _
    $region23: #{tpu_custom_call.1} parent=1 // pred_check_branch
      %77 = sbr.rel (0) target = $region25
    $region24: #{tpu_custom_call.1} parent=1 // pred_region
      _
    $region25: #{tpu_custom_call.1} parent=1 // pred_fallthru
      _
    // Predicated region
    $region26: #{tpu_custom_call.1} parent=1 // pred_check
      _
    $region27: #{tpu_custom_call.1} parent=1 // pred_check_branch
      %79 = sbr.rel (0) target = $region29
    $region28: #{tpu_custom_call.1} parent=1 // pred_region
      _
    $region29: #{tpu_custom_call.1} parent=1 // pred_fallthru
      _
    // Predicated region
    $region30: #{tpu_custom_call.1} parent=1 // pred_check
      _
    $region31: #{tpu_custom_call.1} parent=1 // pred_check_branch
      %81 = sbr.rel (0) target = $region33
    $region32: #{tpu_custom_call.1} parent=1 // pred_region
      %s83 = ssub.s32 1024, 1024
      %84 = vsyncadd [#allocation9], %s83
      %s85 = sshll.u32 [#allocation10], 4
      %s86 = int_to_ptr.vmem [resolvable:$true] %s85
      %91 = dma.hbm_to_vmem [thread:$0]  %s7, 1024, %s86, [#allocation9], 64, 64, 4
    $region33: #{tpu_custom_call.1} parent=1 // pred_fallthru
      _
    // Predicated region
    $region34: #{tpu_custom_call.1} parent=1 // pred_check
      _
    $region35: #{tpu_custom_call.1} parent=1 // pred_check_branch
      %93 = sbr.rel (0) target = $region37
    $region36: #{tpu_custom_call.1} parent=1 // pred_region
      %s95 = ssub.s32 1024, 1024
      %96 = vsyncadd [#allocation12], %s95
      %s97 = sshll.u32 [#allocation11], 4
      %s98 = int_to_ptr.vmem [resolvable:$true] %s97
      %103 = dma.hbm_to_vmem [thread:$0]  %s8, 1024, %s98, [#allocation12], 64, 64, 4
    $region37: #{tpu_custom_call.1} parent=1 // pred_fallthru
      _
    // Predicated region
    $region38: #{tpu_custom_call.1} parent=1 // pred_check
      _
    $region39: #{tpu_custom_call.1} parent=1 // pred_check_branch
      %105 = sbr.rel (0) target = $region41
    $region40: #{tpu_custom_call.1} parent=1 // pred_region
      _
    $region41: #{tpu_custom_call.1} parent=1 // pred_fallthru
      _
    // Predicated region
    $region42: #{tpu_custom_call.1} parent=1 // pred_check
      _
    $region43: #{tpu_custom_call.1} parent=1 // pred_check_branch
      %107 = sbr.rel (0) target = $region45
    $region44: #{tpu_custom_call.1} parent=1 // pred_region
      _
    $region45: #{tpu_custom_call.1} parent=1 // pred_fallthru
      _
    // Predicated region
    $region46: #{tpu_custom_call.1} parent=1 // pred_check
      _
    $region47: #{tpu_custom_call.1} parent=1 // pred_check_branch
      %109 = sbr.rel (0) target = $region49
    $region48: #{tpu_custom_call.1} parent=1 // pred_region
      _
    $region49: #{tpu_custom_call.1} parent=1 // pred_fallthru
      _
    // Predicated region
    $region50: #{tpu_custom_call.1} parent=1 // pred_check
      _
    $region51: #{tpu_custom_call.1} parent=1 // pred_check_branch
      %111 = sbr.rel (0) target = $region53
    $region52: #{tpu_custom_call.1} parent=1 // pred_region
      %s113 = ssub.s32 1024, 1024
      %114 = vsyncadd [#allocation12], %s113
      %s115 = sshll.u32 [#allocation13], 4
      %s116 = int_to_ptr.vmem [resolvable:$true] %s115
      %121 = dma.hbm_to_vmem [thread:$0]  %s12, 1024, %s116, [#allocation12], 64, 64, 4
    $region53: #{tpu_custom_call.1} parent=1 // pred_fallthru
      _
    // Predicated region
    $region54: #{tpu_custom_call.1} parent=1 // pred_check
      _
    $region55: #{tpu_custom_call.1} parent=1 // pred_check_branch
      %123 = sbr.rel (0) target = $region57
    $region56: #{tpu_custom_call.1} parent=1 // pred_region
      %s125 = ssub.s32 1024, 1024
      %126 = vsyncadd [#allocation15], %s125
      %s127 = sshll.u32 [#allocation14], 4
      %s128 = int_to_ptr.vmem [resolvable:$true] %s127
      %133 = dma.hbm_to_vmem [thread:$0]  %s13, 1024, %s128, [#allocation15], 64, 64, 4
    $region57: #{tpu_custom_call.1} parent=1 // pred_fallthru
      _
    // Predicated region
    $region58: #{tpu_custom_call.1} parent=1 // pred_check
      _
    $region59: #{tpu_custom_call.1} parent=1 // pred_check_branch
      %135 = sbr.rel (0) target = $region61
    $region60: #{tpu_custom_call.1} parent=1 // pred_region
      _
    $region61: #{tpu_custom_call.1} parent=1 // pred_fallthru
      _
    // Predicated region
    $region62: #{tpu_custom_call.1} parent=1 // pred_check
      _
    $region63: #{tpu_custom_call.1} parent=1 // pred_check_branch
      %137 = sbr.rel (0) target = $region65
    $region64: #{tpu_custom_call.1} parent=1 // pred_region
      %138 = dma.done [#allocation3], 1024
    $region65: #{tpu_custom_call.1} parent=1 // pred_fallthru
      _
    // Predicated region
    $region66: #{tpu_custom_call.1} parent=1 // pred_check
      _
    $region67: #{tpu_custom_call.1} parent=1 // pred_check_branch
      %140 = sbr.rel (0) target = $region69
    $region68: #{tpu_custom_call.1} parent=1 // pred_region
      %141 = dma.done [#allocation6], 1024
    $region69: #{tpu_custom_call.1} parent=1 // pred_fallthru
      _
    // Predicated region
    $region70: #{tpu_custom_call.1} parent=1 // pred_check
      _
    $region71: #{tpu_custom_call.1} parent=1 // pred_check_branch
      %143 = sbr.rel (0) target = $region73
    $region72: #{tpu_custom_call.1} parent=1 // pred_region
      %144 = dma.done [#allocation6], 1024
    $region73: #{tpu_custom_call.1} parent=1 // pred_fallthru
      _
    // Predicated region
    $region74: #{tpu_custom_call.1} parent=1 // pred_check
      _
    $region75: #{tpu_custom_call.1} parent=1 // pred_check_branch
      %146 = sbr.rel (0) target = $region77
    $region76: #{tpu_custom_call.1} parent=1 // pred_region
      %147 = dma.done [#allocation9], 1024
    $region77: #{tpu_custom_call.1} parent=1 // pred_fallthru
      _
    // Predicated region
    $region78: #{tpu_custom_call.1} parent=1 // pred_check
      _
    $region79: #{tpu_custom_call.1} parent=1 // pred_check_branch
      %149 = sbr.rel (0) target = $region81
    $region80: #{tpu_custom_call.1} parent=1 // pred_region
      %150 = dma.done [#allocation9], 1024
    $region81: #{tpu_custom_call.1} parent=1 // pred_fallthru
      _
    // Predicated region
    $region82: #{tpu_custom_call.1} parent=1 // pred_check
      _
    $region83: #{tpu_custom_call.1} parent=1 // pred_check_branch
      %152 = sbr.rel (0) target = $region85
    $region84: #{tpu_custom_call.1} parent=1 // pred_region
      %153 = dma.done [#allocation12], 1024
    $region85: #{tpu_custom_call.1} parent=1 // pred_fallthru
      _
    // Predicated region
    $region86: #{tpu_custom_call.1} parent=1 // pred_check
      _
    $region87: #{tpu_custom_call.1} parent=1 // pred_check_branch
      %155 = sbr.rel (0) target = $region89
    $region88: #{tpu_custom_call.1} parent=1 // pred_region
      %156 = dma.done [#allocation12], 1024
    $region89: #{tpu_custom_call.1} parent=1 // pred_fallthru
      _
    // Predicated region
    $region90: #{tpu_custom_call.1} parent=1 // pred_check
      _
    $region91: #{tpu_custom_call.1} parent=1 // pred_check_branch
      %158 = sbr.rel (0) target = $region93
    $region92: #{tpu_custom_call.1} parent=1 // pred_region
      %159 = dma.done [#allocation15], 1024
    $region93: #{tpu_custom_call.1} parent=1 // pred_fallthru
      _
    %v161 = vlaneseq
    %v162 = vand.u32 %v161, 127
    %vm163 = vcmp.lt.s32.totalorder %v162, 16
    %v164 = vsel %vm163, 1, 0
    %v165 = vcvt.s32.f32 %v164
    %v166 = vld [vmem:[#allocation2] sm:$0xf]
    %v167 = vld [vmem:[#allocation2 + $0x4] sm:$0xf]
    %v168 = vld [vmem:[#allocation2 + $0x8] sm:$0xf]
    %v169 = vld [vmem:[#allocation2 + $0xc] sm:$0xf]
    %v170 = vld [vmem:[#allocation2 + $0x10] sm:$0xf]
    %v171 = vld [vmem:[#allocation2 + $0x14] sm:$0xf]
    %v172 = vld [vmem:[#allocation2 + $0x18] sm:$0xf]
    %v173 = vld [vmem:[#allocation2 + $0x1c] sm:$0xf]
    %v174 = vld [vmem:[#allocation2 + $0x20] sm:$0xf]
    %v175 = vld [vmem:[#allocation2 + $0x24] sm:$0xf]
    %v176 = vld [vmem:[#allocation2 + $0x28] sm:$0xf]
    %v177 = vld [vmem:[#allocation2 + $0x2c] sm:$0xf]
    %v178 = vld [vmem:[#allocation2 + $0x30] sm:$0xf]
    %v179 = vld [vmem:[#allocation2 + $0x34] sm:$0xf]
    %v180 = vld [vmem:[#allocation2 + $0x38] sm:$0xf]
    %v181 = vld [vmem:[#allocation2 + $0x3c] sm:$0xf]
    %v182 = vld [vmem:[#allocation5] sm:$0xf]
    %v183 = vld [vmem:[#allocation5 + $0x4] sm:$0xf]
    %v184 = vld [vmem:[#allocation5 + $0x8] sm:$0xf]
    %v185 = vld [vmem:[#allocation5 + $0xc] sm:$0xf]
    %v186 = vld [vmem:[#allocation5 + $0x10] sm:$0xf]
    %v187 = vld [vmem:[#allocation5 + $0x14] sm:$0xf]
    %v188 = vld [vmem:[#allocation5 + $0x18] sm:$0xf]
    %v189 = vld [vmem:[#allocation5 + $0x1c] sm:$0xf]
    %v190 = vld [vmem:[#allocation5 + $0x20] sm:$0xf]
    %v191 = vld [vmem:[#allocation5 + $0x24] sm:$0xf]
    %v192 = vld [vmem:[#allocation5 + $0x28] sm:$0xf]
    %v193 = vld [vmem:[#allocation5 + $0x2c] sm:$0xf]
    %v194 = vld [vmem:[#allocation5 + $0x30] sm:$0xf]
    %v195 = vld [vmem:[#allocation5 + $0x34] sm:$0xf]
    %v196 = vld [vmem:[#allocation5 + $0x38] sm:$0xf]
    %v197 = vld [vmem:[#allocation5 + $0x3c] sm:$0xf]
    %v214 = vunpack.c.l.b16 %v166
    %v215 = vunpack.c.l.b16 %v167
    %v216 = vunpack.c.l.b16 %v168
    %v217 = vunpack.c.l.b16 %v169
    %v218 = vunpack.c.l.b16 %v170
    %v219 = vunpack.c.l.b16 %v171
    %v220 = vunpack.c.l.b16 %v172
    %v221 = vunpack.c.l.b16 %v173
    %v222 = vunpack.c.l.b16 %v174
    %v223 = vunpack.c.l.b16 %v175
    %v224 = vunpack.c.l.b16 %v176
    %v225 = vunpack.c.l.b16 %v177
    %v226 = vunpack.c.l.b16 %v178
    %v227 = vunpack.c.l.b16 %v179
    %v228 = vunpack.c.l.b16 %v180
    %v229 = vunpack.c.l.b16 %v181
    %v230 = vpack.c.b16 %v215, %v214
    %v231 = vpack.c.b16 %v217, %v216
    %v232 = vpack.c.b16 %v219, %v218
    %v233 = vpack.c.b16 %v221, %v220
    %v234 = vpack.c.b16 %v223, %v222
    %v235 = vpack.c.b16 %v225, %v224
    %v236 = vpack.c.b16 %v227, %v226
    %v237 = vpack.c.b16 %v229, %v228
    %v262 = vunpack.c.l.b16 %v182
    %v263 = vunpack.c.l.b16 %v183
    %v264 = vunpack.c.l.b16 %v184
    %v265 = vunpack.c.l.b16 %v185
    %v266 = vunpack.c.l.b16 %v186
    %v267 = vunpack.c.l.b16 %v187
    %v268 = vunpack.c.l.b16 %v188
    %v269 = vunpack.c.l.b16 %v189
    %v270 = vunpack.c.l.b16 %v190
    %v271 = vunpack.c.l.b16 %v191
    %v272 = vunpack.c.l.b16 %v192
    %v273 = vunpack.c.l.b16 %v193
    %v274 = vunpack.c.l.b16 %v194
    %v275 = vunpack.c.l.b16 %v195
    %v276 = vunpack.c.l.b16 %v196
    %v277 = vunpack.c.l.b16 %v197
    %v278 = vpack.c.b16 %v263, %v262
    %v279 = vpack.c.b16 %v265, %v264
    %v280 = vpack.c.b16 %v267, %v266
    %v281 = vpack.c.b16 %v269, %v268
    %v282 = vpack.c.b16 %v271, %v270
    %v283 = vpack.c.b16 %v273, %v272
    %v284 = vpack.c.b16 %v275, %v274
    %v285 = vpack.c.b16 %v277, %v276
    %294 = vmatprep.subr.bf16.mxu0 0
    %295 = vmatpush1.bf16.msra.mxu0 %v285
    %296 = vmatprep.subr.bf16.mxu0 0
    %297 = vmatpush1.bf16.msra.mxu0 %v284
    %298 = vmatprep.subr.bf16.mxu0 0
    %299 = vmatpush1.bf16.msra.mxu0 %v283
    %300 = vmatprep.subr.bf16.mxu0 0
    %301 = vmatpush1.bf16.msra.mxu0 %v282
    %302 = vmatprep.subr.bf16.mxu0 0
    %303 = vmatpush1.bf16.msra.mxu0 %v281
    %304 = vmatprep.subr.bf16.mxu0 0
    %305 = vmatpush1.bf16.msra.mxu0 %v280
    %306 = vmatprep.subr.bf16.mxu0 0
    %307 = vmatpush1.bf16.msra.mxu0 %v279
    %308 = vmatprep.subr.bf16.mxu0 0
    %309 = vmatpush1.bf16.msra.mxu0 %v278
    %310 = vmatprep.subr.bf16.mxu0 0
    %311 = vmatpush2.bf16.msra.mxu0 0
    %312 = vmatprep.subr.bf16.mxu0 0
    %313 = vmatpush2.bf16.msra.mxu0 0
    %314 = vmatprep.subr.bf16.mxu0 0
    %315 = vmatpush2.bf16.msra.mxu0 0
    %316 = vmatprep.subr.bf16.mxu0 0
    %317 = vmatpush2.bf16.msra.mxu0 0
    %318 = vmatprep.subr.bf16.mxu0 0
    %319 = vmatpush2.bf16.msra.mxu0 0
    %320 = vmatprep.subr.bf16.mxu0 0
    %321 = vmatpush2.bf16.msra.mxu0 0
    %322 = vmatprep.subr.bf16.mxu0 0
    %323 = vmatpush2.bf16.msra.mxu0 0
    %324 = vmatprep.subr.bf16.mxu0 0
    %325 = vmatpush2.bf16.msra.mxu0 0
    %326 = vmatprep.mubr.bf16.mxu0 0
    %327 = vmatmul.mubr.bf16.gmra.mxu0 %v230
    %v328 = vpop.f32.mrf.mxu0
    %v329 = vadd.f32 0.0, %v328
    %v330 = vpop.f32.mrf.mxu0
    %v331 = vpop.f32.mrf.mxu0
    %v332 = vadd.f32 0.0, %v331
    %v333 = vpop.f32.mrf.mxu0
    %334 = vmatprep.mubr.bf16.mxu0 0
    %335 = vmatmul.mubr.bf16.gmra.mxu0 %v231
    %v336 = vpop.f32.mrf.mxu0
    %v337 = vadd.f32 0.0, %v336
    %v338 = vpop.f32.mrf.mxu0
    %v339 = vpop.f32.mrf.mxu0
    %v340 = vadd.f32 0.0, %v339
    %v341 = vpop.f32.mrf.mxu0
    %342 = vmatprep.mubr.bf16.mxu0 0
    %343 = vmatmul.mubr.bf16.gmra.mxu0 %v232
    %v344 = vpop.f32.mrf.mxu0
    %v345 = vadd.f32 0.0, %v344
    %v346 = vpop.f32.mrf.mxu0
    %v347 = vpop.f32.mrf.mxu0
    %v348 = vadd.f32 0.0, %v347
    %v349 = vpop.f32.mrf.mxu0
    %350 = vmatprep.mubr.bf16.mxu0 0
    %351 = vmatmul.mubr.bf16.gmra.mxu0 %v233
    %v352 = vpop.f32.mrf.mxu0
    %v353 = vadd.f32 0.0, %v352
    %v354 = vpop.f32.mrf.mxu0
    %v355 = vpop.f32.mrf.mxu0
    %v356 = vadd.f32 0.0, %v355
    %v357 = vpop.f32.mrf.mxu0
    %358 = vmatprep.mubr.bf16.mxu0 0
    %359 = vmatmul.mubr.bf16.gmra.mxu0 %v234
    %v360 = vpop.f32.mrf.mxu0
    %v361 = vadd.f32 0.0, %v360
    %v362 = vpop.f32.mrf.mxu0
    %v363 = vpop.f32.mrf.mxu0
    %v364 = vadd.f32 0.0, %v363
    %v365 = vpop.f32.mrf.mxu0
    %366 = vmatprep.mubr.bf16.mxu0 0
    %367 = vmatmul.mubr.bf16.gmra.mxu0 %v235
    %v368 = vpop.f32.mrf.mxu0
    %v369 = vadd.f32 0.0, %v368
    %v370 = vpop.f32.mrf.mxu0
    %v371 = vpop.f32.mrf.mxu0
    %v372 = vadd.f32 0.0, %v371
    %v373 = vpop.f32.mrf.mxu0
    %374 = vmatprep.mubr.bf16.mxu0 0
    %375 = vmatmul.mubr.bf16.gmra.mxu0 %v236
    %v376 = vpop.f32.mrf.mxu0
    %v377 = vadd.f32 0.0, %v376
    %v378 = vpop.f32.mrf.mxu0
    %v379 = vpop.f32.mrf.mxu0
    %v380 = vadd.f32 0.0, %v379
    %v381 = vpop.f32.mrf.mxu0
    %382 = vmatprep.mubr.bf16.mxu0 0
    %383 = vmatmul.mubr.bf16.gmra.mxu0 %v237
    %v384 = vpop.f32.mrf.mxu0
    %v385 = vadd.f32 0.0, %v384
    %v386 = vpop.f32.mrf.mxu0
    %v387 = vpop.f32.mrf.mxu0
    %v388 = vadd.f32 0.0, %v387
    %v389 = vpop.f32.mrf.mxu0
    %390 = vdwg.mxu0
    %v391 = vpack.c.bf16 %v332, %v329
    %v392 = vpack.c.bf16 %v340, %v337
    %v393 = vpack.c.bf16 %v348, %v345
    %v394 = vpack.c.bf16 %v356, %v353
    %v395 = vpack.c.bf16 %v364, %v361
    %v396 = vpack.c.bf16 %v372, %v369
    %v397 = vpack.c.bf16 %v380, %v377
    %v398 = vpack.c.bf16 %v388, %v385
    %v399 = vld [vmem:[#allocation8] sm:$0xf]
    %v400 = vld [vmem:[#allocation8 + $0x4] sm:$0xf]
    %v401 = vld [vmem:[#allocation8 + $0x8] sm:$0xf]
    %v402 = vld [vmem:[#allocation8 + $0xc] sm:$0xf]
    %v403 = vld [vmem:[#allocation8 + $0x10] sm:$0xf]
    %v404 = vld [vmem:[#allocation8 + $0x14] sm:$0xf]
    %v405 = vld [vmem:[#allocation8 + $0x18] sm:$0xf]
    %v406 = vld [vmem:[#allocation8 + $0x1c] sm:$0xf]
    %v407 = vld [vmem:[#allocation8 + $0x20] sm:$0xf]
    %v408 = vld [vmem:[#allocation8 + $0x24] sm:$0xf]
    %v409 = vld [vmem:[#allocation8 + $0x28] sm:$0xf]
    %v410 = vld [vmem:[#allocation8 + $0x2c] sm:$0xf]
    %v411 = vld [vmem:[#allocation8 + $0x30] sm:$0xf]
    %v412 = vld [vmem:[#allocation8 + $0x34] sm:$0xf]
    %v413 = vld [vmem:[#allocation8 + $0x38] sm:$0xf]
    %v414 = vld [vmem:[#allocation8 + $0x3c] sm:$0xf]
    %v431 = vunpack.c.l.b16 %v399
    %v432 = vunpack.c.l.b16 %v400
    %v433 = vunpack.c.l.b16 %v401
    %v434 = vunpack.c.l.b16 %v402
    %v435 = vunpack.c.l.b16 %v403
    %v436 = vunpack.c.l.b16 %v404
    %v437 = vunpack.c.l.b16 %v405
    %v438 = vunpack.c.l.b16 %v406
    %v439 = vunpack.c.l.b16 %v407
    %v440 = vunpack.c.l.b16 %v408
    %v441 = vunpack.c.l.b16 %v409
    %v442 = vunpack.c.l.b16 %v410
    %v443 = vunpack.c.l.b16 %v411
    %v444 = vunpack.c.l.b16 %v412
    %v445 = vunpack.c.l.b16 %v413
    %v446 = vunpack.c.l.b16 %v414
    %v447 = vpack.c.b16 %v432, %v431
    %v448 = vpack.c.b16 %v434, %v433
    %v449 = vpack.c.b16 %v436, %v435
    %v450 = vpack.c.b16 %v438, %v437
    %v451 = vpack.c.b16 %v440, %v439
    %v452 = vpack.c.b16 %v442, %v441
    %v453 = vpack.c.b16 %v444, %v443
    %v454 = vpack.c.b16 %v446, %v445
    %463 = vmatprep.subr.bf16.mxu0 0
    %464 = vmatpush1.bf16.msra.mxu0 %v454
    %465 = vmatprep.subr.bf16.mxu0 0
    %466 = vmatpush1.bf16.msra.mxu0 %v453
    %467 = vmatprep.subr.bf16.mxu0 0
    %468 = vmatpush1.bf16.msra.mxu0 %v452
    %469 = vmatprep.subr.bf16.mxu0 0
    %470 = vmatpush1.bf16.msra.mxu0 %v451
    %471 = vmatprep.subr.bf16.mxu0 0
    %472 = vmatpush1.bf16.msra.mxu0 %v450
    %473 = vmatprep.subr.bf16.mxu0 0
    %474 = vmatpush1.bf16.msra.mxu0 %v449
    %475 = vmatprep.subr.bf16.mxu0 0
    %476 = vmatpush1.bf16.msra.mxu0 %v448
    %477 = vmatprep.subr.bf16.mxu0 0
    %478 = vmatpush1.bf16.msra.mxu0 %v447
    %479 = vmatprep.subr.bf16.mxu0 0
    %480 = vmatpush2.bf16.msra.mxu0 0
    %481 = vmatprep.subr.bf16.mxu0 0
    %482 = vmatpush2.bf16.msra.mxu0 0
    %483 = vmatprep.subr.bf16.mxu0 0
    %484 = vmatpush2.bf16.msra.mxu0 0
    %485 = vmatprep.subr.bf16.mxu0 0
    %486 = vmatpush2.bf16.msra.mxu0 0
    %487 = vmatprep.subr.bf16.mxu0 0
    %488 = vmatpush2.bf16.msra.mxu0 0
    %489 = vmatprep.subr.bf16.mxu0 0
    %490 = vmatpush2.bf16.msra.mxu0 0
    %491 = vmatprep.subr.bf16.mxu0 0
    %492 = vmatpush2.bf16.msra.mxu0 0
    %493 = vmatprep.subr.bf16.mxu0 0
    %494 = vmatpush2.bf16.msra.mxu0 0
    %495 = vmatprep.mubr.bf16.mxu0 0
    %496 = vmatmul.mubr.bf16.gmra.mxu0 %v391
    %v497 = vpop.f32.mrf.mxu0
    %v498 = vadd.f32 0.0, %v497
    %v499 = vpop.f32.mrf.mxu0
    %v500 = vpop.f32.mrf.mxu0
    %v501 = vadd.f32 0.0, %v500
    %v502 = vpop.f32.mrf.mxu0
    %503 = vmatprep.mubr.bf16.mxu0 0
    %504 = vmatmul.mubr.bf16.gmra.mxu0 %v392
    %v505 = vpop.f32.mrf.mxu0
    %v506 = vadd.f32 0.0, %v505
    %v507 = vpop.f32.mrf.mxu0
    %v508 = vpop.f32.mrf.mxu0
    %v509 = vadd.f32 0.0, %v508
    %v510 = vpop.f32.mrf.mxu0
    %511 = vmatprep.mubr.bf16.mxu0 0
    %512 = vmatmul.mubr.bf16.gmra.mxu0 %v393
    %v513 = vpop.f32.mrf.mxu0
    %v514 = vadd.f32 0.0, %v513
    %v515 = vpop.f32.mrf.mxu0
    %v516 = vpop.f32.mrf.mxu0
    %v517 = vadd.f32 0.0, %v516
    %v518 = vpop.f32.mrf.mxu0
    %519 = vmatprep.mubr.bf16.mxu0 0
    %520 = vmatmul.mubr.bf16.gmra.mxu0 %v394
    %v521 = vpop.f32.mrf.mxu0
    %v522 = vadd.f32 0.0, %v521
    %v523 = vpop.f32.mrf.mxu0
    %v524 = vpop.f32.mrf.mxu0
    %v525 = vadd.f32 0.0, %v524
    %v526 = vpop.f32.mrf.mxu0
    %527 = vmatprep.mubr.bf16.mxu0 0
    %528 = vmatmul.mubr.bf16.gmra.mxu0 %v395
    %v529 = vpop.f32.mrf.mxu0
    %v530 = vadd.f32 0.0, %v529
    %v531 = vpop.f32.mrf.mxu0
    %v532 = vpop.f32.mrf.mxu0
    %v533 = vadd.f32 0.0, %v532
    %v534 = vpop.f32.mrf.mxu0
    %535 = vmatprep.mubr.bf16.mxu0 0
    %536 = vmatmul.mubr.bf16.gmra.mxu0 %v396
    %v537 = vpop.f32.mrf.mxu0
    %v538 = vadd.f32 0.0, %v537
    %v539 = vpop.f32.mrf.mxu0
    %v540 = vpop.f32.mrf.mxu0
    %v541 = vadd.f32 0.0, %v540
    %v542 = vpop.f32.mrf.mxu0
    %543 = vmatprep.mubr.bf16.mxu0 0
    %544 = vmatmul.mubr.bf16.gmra.mxu0 %v397
    %v545 = vpop.f32.mrf.mxu0
    %v546 = vadd.f32 0.0, %v545
    %v547 = vpop.f32.mrf.mxu0
    %v548 = vpop.f32.mrf.mxu0
    %v549 = vadd.f32 0.0, %v548
    %v550 = vpop.f32.mrf.mxu0
    %551 = vmatprep.mubr.bf16.mxu0 0
    %552 = vmatmul.mubr.bf16.gmra.mxu0 %v398
    %v553 = vpop.f32.mrf.mxu0
    %v554 = vadd.f32 0.0, %v553
    %v555 = vpop.f32.mrf.mxu0
    %v556 = vpop.f32.mrf.mxu0
    %v557 = vadd.f32 0.0, %v556
    %v558 = vpop.f32.mrf.mxu0
    %559 = vdwg.mxu0
    %v560 = vld [vmem:[#allocation7] sm:$0xf]
    %v561 = vld [vmem:[#allocation7 + $0x4] sm:$0xf]
    %v562 = vld [vmem:[#allocation7 + $0x8] sm:$0xf]
    %v563 = vld [vmem:[#allocation7 + $0xc] sm:$0xf]
    %v564 = vld [vmem:[#allocation7 + $0x10] sm:$0xf]
    %v565 = vld [vmem:[#allocation7 + $0x14] sm:$0xf]
    %v566 = vld [vmem:[#allocation7 + $0x18] sm:$0xf]
    %v567 = vld [vmem:[#allocation7 + $0x1c] sm:$0xf]
    %v568 = vld [vmem:[#allocation7 + $0x20] sm:$0xf]
    %v569 = vld [vmem:[#allocation7 + $0x24] sm:$0xf]
    %v570 = vld [vmem:[#allocation7 + $0x28] sm:$0xf]
    %v571 = vld [vmem:[#allocation7 + $0x2c] sm:$0xf]
    %v572 = vld [vmem:[#allocation7 + $0x30] sm:$0xf]
    %v573 = vld [vmem:[#allocation7 + $0x34] sm:$0xf]
    %v574 = vld [vmem:[#allocation7 + $0x38] sm:$0xf]
    %v575 = vld [vmem:[#allocation7 + $0x3c] sm:$0xf]
    %v592 = vunpack.c.l.b16 %v560
    %v593 = vunpack.c.l.b16 %v561
    %v594 = vunpack.c.l.b16 %v562
    %v595 = vunpack.c.l.b16 %v563
    %v596 = vunpack.c.l.b16 %v564
    %v597 = vunpack.c.l.b16 %v565
    %v598 = vunpack.c.l.b16 %v566
    %v599 = vunpack.c.l.b16 %v567
    %v600 = vunpack.c.l.b16 %v568
    %v601 = vunpack.c.l.b16 %v569
    %v602 = vunpack.c.l.b16 %v570
    %v603 = vunpack.c.l.b16 %v571
    %v604 = vunpack.c.l.b16 %v572
    %v605 = vunpack.c.l.b16 %v573
    %v606 = vunpack.c.l.b16 %v574
    %v607 = vunpack.c.l.b16 %v575
    %v608 = vpack.c.b16 %v593, %v592
    %v609 = vpack.c.b16 %v595, %v594
    %v610 = vpack.c.b16 %v597, %v596
    %v611 = vpack.c.b16 %v599, %v598
    %v612 = vpack.c.b16 %v601, %v600
    %v613 = vpack.c.b16 %v603, %v602
    %v614 = vpack.c.b16 %v605, %v604
    %v615 = vpack.c.b16 %v607, %v606
    %624 = vmatprep.subr.bf16.mxu0 0
    %625 = vmatpush1.bf16.msra.mxu0 %v615
    %626 = vmatprep.subr.bf16.mxu0 0
    %627 = vmatpush1.bf16.msra.mxu0 %v614
    %628 = vmatprep.subr.bf16.mxu0 0
    %629 = vmatpush1.bf16.msra.mxu0 %v613
    %630 = vmatprep.subr.bf16.mxu0 0
    %631 = vmatpush1.bf16.msra.mxu0 %v612
    %632 = vmatprep.subr.bf16.mxu0 0
    %633 = vmatpush1.bf16.msra.mxu0 %v611
    %634 = vmatprep.subr.bf16.mxu0 0
    %635 = vmatpush1.bf16.msra.mxu0 %v610
    %636 = vmatprep.subr.bf16.mxu0 0
    %637 = vmatpush1.bf16.msra.mxu0 %v609
    %638 = vmatprep.subr.bf16.mxu0 0
    %639 = vmatpush1.bf16.msra.mxu0 %v608
    %640 = vmatprep.subr.bf16.mxu0 0
    %641 = vmatpush2.bf16.msra.mxu0 0
    %642 = vmatprep.subr.bf16.mxu0 0
    %643 = vmatpush2.bf16.msra.mxu0 0
    %644 = vmatprep.subr.bf16.mxu0 0
    %645 = vmatpush2.bf16.msra.mxu0 0
    %646 = vmatprep.subr.bf16.mxu0 0
    %647 = vmatpush2.bf16.msra.mxu0 0
    %648 = vmatprep.subr.bf16.mxu0 0
    %649 = vmatpush2.bf16.msra.mxu0 0
    %650 = vmatprep.subr.bf16.mxu0 0
    %651 = vmatpush2.bf16.msra.mxu0 0
    %652 = vmatprep.subr.bf16.mxu0 0
    %653 = vmatpush2.bf16.msra.mxu0 0
    %654 = vmatprep.subr.bf16.mxu0 0
    %655 = vmatpush2.bf16.msra.mxu0 0
    %656 = vmatprep.mubr.bf16.mxu0 0
    %657 = vmatmul.mubr.bf16.gmra.mxu0 %v278
    %v658 = vpop.f32.mrf.mxu0
    %v659 = vadd.f32 %v498, %v658
    %v660 = vpop.f32.mrf.mxu0
    %v661 = vpop.f32.mrf.mxu0
    %v662 = vadd.f32 %v501, %v661
    %v663 = vpop.f32.mrf.mxu0
    %664 = vmatprep.mubr.bf16.mxu0 0
    %665 = vmatmul.mubr.bf16.gmra.mxu0 %v279
    %v666 = vpop.f32.mrf.mxu0
    %v667 = vadd.f32 %v506, %v666
    %v668 = vpop.f32.mrf.mxu0
    %v669 = vpop.f32.mrf.mxu0
    %v670 = vadd.f32 %v509, %v669
    %v671 = vpop.f32.mrf.mxu0
    %672 = vmatprep.mubr.bf16.mxu0 0
    %673 = vmatmul.mubr.bf16.gmra.mxu0 %v280
    %v674 = vpop.f32.mrf.mxu0
    %v675 = vadd.f32 %v514, %v674
    %v676 = vpop.f32.mrf.mxu0
    %v677 = vpop.f32.mrf.mxu0
    %v678 = vadd.f32 %v517, %v677
    %v679 = vpop.f32.mrf.mxu0
    %680 = vmatprep.mubr.bf16.mxu0 0
    %681 = vmatmul.mubr.bf16.gmra.mxu0 %v281
    %v682 = vpop.f32.mrf.mxu0
    %v683 = vadd.f32 %v522, %v682
    %v684 = vpop.f32.mrf.mxu0
    %v685 = vpop.f32.mrf.mxu0
    %v686 = vadd.f32 %v525, %v685
    %v687 = vpop.f32.mrf.mxu0
    %688 = vmatprep.mubr.bf16.mxu0 0
    %689 = vmatmul.mubr.bf16.gmra.mxu0 %v282
    %v690 = vpop.f32.mrf.mxu0
    %v691 = vadd.f32 %v530, %v690
    %v692 = vpop.f32.mrf.mxu0
    %v693 = vpop.f32.mrf.mxu0
    %v694 = vadd.f32 %v533, %v693
    %v695 = vpop.f32.mrf.mxu0
    %696 = vmatprep.mubr.bf16.mxu0 0
    %697 = vmatmul.mubr.bf16.gmra.mxu0 %v283
    %v698 = vpop.f32.mrf.mxu0
    %v699 = vadd.f32 %v538, %v698
    %v700 = vpop.f32.mrf.mxu0
    %v701 = vpop.f32.mrf.mxu0
    %v702 = vadd.f32 %v541, %v701
    %v703 = vpop.f32.mrf.mxu0
    %704 = vmatprep.mubr.bf16.mxu0 0
    %705 = vmatmul.mubr.bf16.gmra.mxu0 %v284
    %v706 = vpop.f32.mrf.mxu0
    %v707 = vadd.f32 %v546, %v706
    %v708 = vpop.f32.mrf.mxu0
    %v709 = vpop.f32.mrf.mxu0
    %v710 = vadd.f32 %v549, %v709
    %v711 = vpop.f32.mrf.mxu0
    %712 = vmatprep.mubr.bf16.mxu0 0
    %713 = vmatmul.mubr.bf16.gmra.mxu0 %v285
    %v714 = vpop.f32.mrf.mxu0
    %v715 = vadd.f32 %v554, %v714
    %v716 = vpop.f32.mrf.mxu0
    %v717 = vpop.f32.mrf.mxu0
    %v718 = vadd.f32 %v557, %v717
    %v719 = vpop.f32.mrf.mxu0
    %720 = vdwg.mxu0
    %v721 = vld [vmem:[%s4] sm:$0x1]
    %v723 = vlaneseq
    %v724 = vshrl.u32 %v723, 7
    %v725 = vsub.s32 0, %v724
    %v726 = vrot.slane %v721, %v725
    %v728 = vadd.f32 %v659, %v726
    %v729 = vadd.f32 %v662, %v726
    %v730 = vadd.f32 %v667, %v726
    %v731 = vadd.f32 %v670, %v726
    %v732 = vadd.f32 %v675, %v726
    %v733 = vadd.f32 %v678, %v726
    %v734 = vadd.f32 %v683, %v726
    %v735 = vadd.f32 %v686, %v726
    %v736 = vadd.f32 %v691, %v726
    %v737 = vadd.f32 %v694, %v726
    %v738 = vadd.f32 %v699, %v726
    %v739 = vadd.f32 %v702, %v726
    %v740 = vadd.f32 %v707, %v726
    %v741 = vadd.f32 %v710, %v726
    %v742 = vadd.f32 %v715, %v726
    %v743 = vadd.f32 %v718, %v726
    %744 = vmatprep.subr.mxu0 0.0
    %745 = vmatpush1.msra.mxu0 %v743
    %746 = vmatprep.subr.mxu0 0.0
    %747 = vmatpush1.msra.mxu0 %v742
    %748 = vmatprep.subr.mxu0 0.0
    %749 = vmatpush1.msra.mxu0 %v741
    %750 = vmatprep.subr.mxu0 0.0
    %751 = vmatpush1.msra.mxu0 %v740
    %752 = vmatprep.subr.mxu0 0.0
    %753 = vmatpush1.msra.mxu0 %v739
    %754 = vmatprep.subr.mxu0 0.0
    %755 = vmatpush1.msra.mxu0 %v738
    %756 = vmatprep.subr.mxu0 0.0
    %757 = vmatpush1.msra.mxu0 %v737
    %758 = vmatprep.subr.mxu0 0.0
    %759 = vmatpush1.msra.mxu0 %v736
    %760 = vmatprep.subr.mxu0 0.0
    %761 = vmatpush1.msra.mxu0 %v735
    %762 = vmatprep.subr.mxu0 0.0
    %763 = vmatpush1.msra.mxu0 %v734
    %764 = vmatprep.subr.mxu0 0.0
    %765 = vmatpush1.msra.mxu0 %v733
    %766 = vmatprep.subr.mxu0 0.0
    %767 = vmatpush1.msra.mxu0 %v732
    %768 = vmatprep.subr.mxu0 0.0
    %769 = vmatpush1.msra.mxu0 %v731
    %770 = vmatprep.subr.mxu0 0.0
    %771 = vmatpush1.msra.mxu0 %v730
    %772 = vmatprep.subr.mxu0 0.0
    %773 = vmatpush1.msra.mxu0 %v729
    %774 = vmatprep.subr.mxu0 0.0
    %775 = vmatpush1.msra.mxu0 %v728
    %776 = vmatprep.subr.mxu0 0.0
    %777 = vmatpush2.msra.mxu0 0.0
    %778 = vmatprep.subr.mxu0 0.0
    %779 = vmatpush2.msra.mxu0 0.0
    %780 = vmatprep.subr.mxu0 0.0
    %781 = vmatpush2.msra.mxu0 0.0
    %782 = vmatprep.subr.mxu0 0.0
    %783 = vmatpush2.msra.mxu0 0.0
    %784 = vmatprep.subr.mxu0 0.0
    %785 = vmatpush2.msra.mxu0 0.0
    %786 = vmatprep.subr.mxu0 0.0
    %787 = vmatpush2.msra.mxu0 0.0
    %788 = vmatprep.subr.mxu0 0.0
    %789 = vmatpush2.msra.mxu0 0.0
    %790 = vmatprep.subr.mxu0 0.0
    %791 = vmatpush2.msra.mxu0 0.0
    %792 = vmatprep.subr.mxu0 0.0
    %793 = vmatpush2.msra.mxu0 0.0
    %794 = vmatprep.subr.mxu0 0.0
    %795 = vmatpush2.msra.mxu0 0.0
    %796 = vmatprep.subr.mxu0 0.0
    %797 = vmatpush2.msra.mxu0 0.0
    %798 = vmatprep.subr.mxu0 0.0
    %799 = vmatpush2.msra.mxu0 0.0
    %800 = vmatprep.subr.mxu0 0.0
    %801 = vmatpush2.msra.mxu0 0.0
    %802 = vmatprep.subr.mxu0 0.0
    %803 = vmatpush2.msra.mxu0 0.0
    %804 = vmatprep.subr.mxu0 0.0
    %805 = vmatpush2.msra.mxu0 0.0
    %806 = vmatprep.subr.mxu0 0.0
    %807 = vmatpush2.msra.mxu0 0.0
    %808 = vmatprep.mubr.f32.mxu0 0.0
    %809 = vmatmul.mubr.f32.gmra.mxu0 %v165
    %v810 = vpop.f32.mrf.mxu0
    %v811 = vadd.f32 0.0, %v810
    %v812 = vpop.f32.mrf.mxu0
    %813 = vdwg.mxu0
    %v814 = vmul.f32 %v728, %v728
    %v815 = vmul.f32 %v729, %v729
    %v816 = vmul.f32 %v730, %v730
    %v817 = vmul.f32 %v731, %v731
    %v818 = vmul.f32 %v732, %v732
    %v819 = vmul.f32 %v733, %v733
    %v820 = vmul.f32 %v734, %v734
    %v821 = vmul.f32 %v735, %v735
    %v822 = vmul.f32 %v736, %v736
    %v823 = vmul.f32 %v737, %v737
    %v824 = vmul.f32 %v738, %v738
    %v825 = vmul.f32 %v739, %v739
    %v826 = vmul.f32 %v740, %v740
    %v827 = vmul.f32 %v741, %v741
    %v828 = vmul.f32 %v742, %v742
    %v829 = vmul.f32 %v743, %v743
    %830 = vmatprep.subr.mxu0 0.0
    %831 = vmatpush1.msra.mxu0 %v829
    %832 = vmatprep.subr.mxu0 0.0
    %833 = vmatpush1.msra.mxu0 %v828
    %834 = vmatprep.subr.mxu0 0.0
    %835 = vmatpush1.msra.mxu0 %v827
    %836 = vmatprep.subr.mxu0 0.0
    %837 = vmatpush1.msra.mxu0 %v826
    %838 = vmatprep.subr.mxu0 0.0
    %839 = vmatpush1.msra.mxu0 %v825
    %840 = vmatprep.subr.mxu0 0.0
    %841 = vmatpush1.msra.mxu0 %v824
    %842 = vmatprep.subr.mxu0 0.0
    %843 = vmatpush1.msra.mxu0 %v823
    %844 = vmatprep.subr.mxu0 0.0
    %845 = vmatpush1.msra.mxu0 %v822
    %846 = vmatprep.subr.mxu0 0.0
    %847 = vmatpush1.msra.mxu0 %v821
    %848 = vmatprep.subr.mxu0 0.0
    %849 = vmatpush1.msra.mxu0 %v820
    %850 = vmatprep.subr.mxu0 0.0
    %851 = vmatpush1.msra.mxu0 %v819
    %852 = vmatprep.subr.mxu0 0.0
    %853 = vmatpush1.msra.mxu0 %v818
    %854 = vmatprep.subr.mxu0 0.0
    %855 = vmatpush1.msra.mxu0 %v817
    %856 = vmatprep.subr.mxu0 0.0
    %857 = vmatpush1.msra.mxu0 %v816
    %858 = vmatprep.subr.mxu0 0.0
    %859 = vmatpush1.msra.mxu0 %v815
    %860 = vmatprep.subr.mxu0 0.0
    %861 = vmatpush1.msra.mxu0 %v814
    %862 = vmatprep.subr.mxu0 0.0
    %863 = vmatpush2.msra.mxu0 0.0
    %864 = vmatprep.subr.mxu0 0.0
    %865 = vmatpush2.msra.mxu0 0.0
    %866 = vmatprep.subr.mxu0 0.0
    %867 = vmatpush2.msra.mxu0 0.0
    %868 = vmatprep.subr.mxu0 0.0
    %869 = vmatpush2.msra.mxu0 0.0
    %870 = vmatprep.subr.mxu0 0.0
    %871 = vmatpush2.msra.mxu0 0.0
    %872 = vmatprep.subr.mxu0 0.0
    %873 = vmatpush2.msra.mxu0 0.0
    %874 = vmatprep.subr.mxu0 0.0
    %875 = vmatpush2.msra.mxu0 0.0
    %876 = vmatprep.subr.mxu0 0.0
    %877 = vmatpush2.msra.mxu0 0.0
    %878 = vmatprep.subr.mxu0 0.0
    %879 = vmatpush2.msra.mxu0 0.0
    %880 = vmatprep.subr.mxu0 0.0
    %881 = vmatpush2.msra.mxu0 0.0
    %882 = vmatprep.subr.mxu0 0.0
    %883 = vmatpush2.msra.mxu0 0.0
    %884 = vmatprep.subr.mxu0 0.0
    %885 = vmatpush2.msra.mxu0 0.0
    %886 = vmatprep.subr.mxu0 0.0
    %887 = vmatpush2.msra.mxu0 0.0
    %888 = vmatprep.subr.mxu0 0.0
    %889 = vmatpush2.msra.mxu0 0.0
    %890 = vmatprep.subr.mxu0 0.0
    %891 = vmatpush2.msra.mxu0 0.0
    %892 = vmatprep.subr.mxu0 0.0
    %893 = vmatpush2.msra.mxu0 0.0
    %894 = vmatprep.mubr.f32.mxu0 0.0
    %895 = vmatmul.mubr.f32.gmra.mxu0 %v165
    %v896 = vpop.f32.mrf.mxu0
    %v897 = vadd.f32 0.0, %v896
    %v898 = vpop.f32.mrf.mxu0
    %899 = vdwg.mxu0
    %v900 = vmul.f32 %v811, 0.0625
    %v901 = vmul.f32 %v897, 0.0625
    %v902 = vmul.f32 %v900, %v900
    %v903 = vsub.f32 %v901, %v902
    %v904 = vmax.f32 %v903, 0.0
    %v905 = vld [vmem:[%s5] sm:$0x1]
    %v906 = vadd.f32 %v904, 1e-05
    %v907 = vrsqrt.pop %v906
    %v908 = vmul.f32 %v905, %v907
    %v909 = vld [vmem:[%s6] sm:$0x1]
    %v910 = vmul.f32 %v900, %v908
    %v911 = vsub.f32 %v909, %v910
    %v913 = vlaneseq
    %v914 = vshrl.u32 %v913, 7
    %v915 = vsub.s32 0, %v914
    %v916 = vrot.slane %v908, %v915
    %v918 = vmul.f32 %v728, %v916
    %v919 = vmul.f32 %v729, %v916
    %v920 = vmul.f32 %v730, %v916
    %v921 = vmul.f32 %v731, %v916
    %v922 = vmul.f32 %v732, %v916
    %v923 = vmul.f32 %v733, %v916
    %v924 = vmul.f32 %v734, %v916
    %v925 = vmul.f32 %v735, %v916
    %v926 = vmul.f32 %v736, %v916
    %v927 = vmul.f32 %v737, %v916
    %v928 = vmul.f32 %v738, %v916
    %v929 = vmul.f32 %v739, %v916
    %v930 = vmul.f32 %v740, %v916
    %v931 = vmul.f32 %v741, %v916
    %v932 = vmul.f32 %v742, %v916
    %v933 = vmul.f32 %v743, %v916
    %v935 = vlaneseq
    %v936 = vshrl.u32 %v935, 7
    %v937 = vsub.s32 0, %v936
    %v938 = vrot.slane %v911, %v937
    %v940 = vadd.f32 %v918, %v938
    %v941 = vadd.f32 %v919, %v938
    %v942 = vadd.f32 %v920, %v938
    %v943 = vadd.f32 %v921, %v938
    %v944 = vadd.f32 %v922, %v938
    %v945 = vadd.f32 %v923, %v938
    %v946 = vadd.f32 %v924, %v938
    %v947 = vadd.f32 %v925, %v938
    %v948 = vadd.f32 %v926, %v938
    %v949 = vadd.f32 %v927, %v938
    %v950 = vadd.f32 %v928, %v938
    %v951 = vadd.f32 %v929, %v938
    %v952 = vadd.f32 %v930, %v938
    %v953 = vadd.f32 %v931, %v938
    %v954 = vadd.f32 %v932, %v938
    %v955 = vadd.f32 %v933, %v938
    %vm956 = vcmp.gt.f32.partialorder %v940, 0.0
    %vm957 = vcmp.gt.f32.partialorder %v941, 0.0
    %vm958 = vcmp.gt.f32.partialorder %v942, 0.0
    %vm959 = vcmp.gt.f32.partialorder %v943, 0.0
    %vm960 = vcmp.gt.f32.partialorder %v944, 0.0
    %vm961 = vcmp.gt.f32.partialorder %v945, 0.0
    %vm962 = vcmp.gt.f32.partialorder %v946, 0.0
    %vm963 = vcmp.gt.f32.partialorder %v947, 0.0
    %vm964 = vcmp.gt.f32.partialorder %v948, 0.0
    %vm965 = vcmp.gt.f32.partialorder %v949, 0.0
    %vm966 = vcmp.gt.f32.partialorder %v950, 0.0
    %vm967 = vcmp.gt.f32.partialorder %v951, 0.0
    %vm968 = vcmp.gt.f32.partialorder %v952, 0.0
    %vm969 = vcmp.gt.f32.partialorder %v953, 0.0
    %vm970 = vcmp.gt.f32.partialorder %v954, 0.0
    %vm971 = vcmp.gt.f32.partialorder %v955, 0.0
    %v972 = vmin.f32 %v940, 0.0
    %v973 = vmin.f32 %v941, 0.0
    %v974 = vmin.f32 %v942, 0.0
    %v975 = vmin.f32 %v943, 0.0
    %v976 = vmin.f32 %v944, 0.0
    %v977 = vmin.f32 %v945, 0.0
    %v978 = vmin.f32 %v946, 0.0
    %v979 = vmin.f32 %v947, 0.0
    %v980 = vmin.f32 %v948, 0.0
    %v981 = vmin.f32 %v949, 0.0
    %v982 = vmin.f32 %v950, 0.0
    %v983 = vmin.f32 %v951, 0.0
    %v984 = vmin.f32 %v952, 0.0
    %v985 = vmin.f32 %v953, 0.0
    %v986 = vmin.f32 %v954, 0.0
    %v987 = vmin.f32 %v955, 0.0
    %v988 = vmul.f32 %v972, 1.442695
    %v989 = vpow.pop %v988
    %v990 = vmul.f32 %v973, 1.442695
    %v991 = vpow.pop %v990
    %v992 = vmul.f32 %v974, 1.442695
    %v993 = vpow.pop %v992
    %v994 = vmul.f32 %v975, 1.442695
    %v995 = vpow.pop %v994
    %v996 = vmul.f32 %v976, 1.442695
    %v997 = vpow.pop %v996
    %v998 = vmul.f32 %v977, 1.442695
    %v999 = vpow.pop %v998
    %v1000 = vmul.f32 %v978, 1.442695
    %v1001 = vpow.pop %v1000
    %v1002 = vmul.f32 %v979, 1.442695
    %v1003 = vpow.pop %v1002
    %v1004 = vmul.f32 %v980, 1.442695
    %v1005 = vpow.pop %v1004
    %v1006 = vmul.f32 %v981, 1.442695
    %v1007 = vpow.pop %v1006
    %v1008 = vmul.f32 %v982, 1.442695
    %v1009 = vpow.pop %v1008
    %v1010 = vmul.f32 %v983, 1.442695
    %v1011 = vpow.pop %v1010
    %v1012 = vmul.f32 %v984, 1.442695
    %v1013 = vpow.pop %v1012
    %v1014 = vmul.f32 %v985, 1.442695
    %v1015 = vpow.pop %v1014
    %v1016 = vmul.f32 %v986, 1.442695
    %v1017 = vpow.pop %v1016
    %v1018 = vmul.f32 %v987, 1.442695
    %v1019 = vpow.pop %v1018
    %v1020 = vsub.f32 %v989, 1.0
    %v1021 = vsub.f32 %v991, 1.0
    %v1022 = vsub.f32 %v993, 1.0
    %v1023 = vsub.f32 %v995, 1.0
    %v1024 = vsub.f32 %v997, 1.0
    %v1025 = vsub.f32 %v999, 1.0
    %v1026 = vsub.f32 %v1001, 1.0
    %v1027 = vsub.f32 %v1003, 1.0
    %v1028 = vsub.f32 %v1005, 1.0
    %v1029 = vsub.f32 %v1007, 1.0
    %v1030 = vsub.f32 %v1009, 1.0
    %v1031 = vsub.f32 %v1011, 1.0
    %v1032 = vsub.f32 %v1013, 1.0
    %v1033 = vsub.f32 %v1015, 1.0
    %v1034 = vsub.f32 %v1017, 1.0
    %v1035 = vsub.f32 %v1019, 1.0
    %v1036 = vsel %vm956, %v940, %v1020
    %v1037 = vsel %vm957, %v941, %v1021
    %v1038 = vsel %vm958, %v942, %v1022
    %v1039 = vsel %vm959, %v943, %v1023
    %v1040 = vsel %vm960, %v944, %v1024
    %v1041 = vsel %vm961, %v945, %v1025
    %v1042 = vsel %vm962, %v946, %v1026
    %v1043 = vsel %vm963, %v947, %v1027
    %v1044 = vsel %vm964, %v948, %v1028
    %v1045 = vsel %vm965, %v949, %v1029
    %v1046 = vsel %vm966, %v950, %v1030
    %v1047 = vsel %vm967, %v951, %v1031
    %v1048 = vsel %vm968, %v952, %v1032
    %v1049 = vsel %vm969, %v953, %v1033
    %v1050 = vsel %vm970, %v954, %v1034
    %v1051 = vsel %vm971, %v955, %v1035
    %v1052 = vpack.c.bf16 %v1037, %v1036
    %v1053 = vpack.c.bf16 %v1039, %v1038
    %v1054 = vpack.c.bf16 %v1041, %v1040
    %v1055 = vpack.c.bf16 %v1043, %v1042
    %v1056 = vpack.c.bf16 %v1045, %v1044
    %v1057 = vpack.c.bf16 %v1047, %v1046
    %v1058 = vpack.c.bf16 %v1049, %v1048
    %v1059 = vpack.c.bf16 %v1051, %v1050
    %1060 = vmatprep.subr.bf16.mxu0 0
    %1061 = vmatpush1.bf16.msra.mxu0 %v1059
    %1062 = vmatprep.subr.bf16.mxu0 0
    %1063 = vmatpush1.bf16.msra.mxu0 %v1058
    %1064 = vmatprep.subr.bf16.mxu0 0
    %1065 = vmatpush1.bf16.msra.mxu0 %v1057
    %1066 = vmatprep.subr.bf16.mxu0 0
    %1067 = vmatpush1.bf16.msra.mxu0 %v1056
    %1068 = vmatprep.subr.bf16.mxu0 0
    %1069 = vmatpush1.bf16.msra.mxu0 %v1055
    %1070 = vmatprep.subr.bf16.mxu0 0
    %1071 = vmatpush1.bf16.msra.mxu0 %v1054
    %1072 = vmatprep.subr.bf16.mxu0 0
    %1073 = vmatpush1.bf16.msra.mxu0 %v1053
    %1074 = vmatprep.subr.bf16.mxu0 0
    %1075 = vmatpush1.bf16.msra.mxu0 %v1052
    %1076 = vmatprep.subr.bf16.mxu0 0
    %1077 = vmatpush2.bf16.msra.mxu0 0
    %1078 = vmatprep.subr.bf16.mxu0 0
    %1079 = vmatpush2.bf16.msra.mxu0 0
    %1080 = vmatprep.subr.bf16.mxu0 0
    %1081 = vmatpush2.bf16.msra.mxu0 0
    %1082 = vmatprep.subr.bf16.mxu0 0
    %1083 = vmatpush2.bf16.msra.mxu0 0
    %1084 = vmatprep.subr.bf16.mxu0 0
    %1085 = vmatpush2.bf16.msra.mxu0 0
    %1086 = vmatprep.subr.bf16.mxu0 0
    %1087 = vmatpush2.bf16.msra.mxu0 0
    %1088 = vmatprep.subr.bf16.mxu0 0
    %1089 = vmatpush2.bf16.msra.mxu0 0
    %1090 = vmatprep.subr.bf16.mxu0 0
    %1091 = vmatpush2.bf16.msra.mxu0 0
    %1092 = vmatprep.mubr.bf16.mxu0 0
    %1093 = vmatmul.mubr.bf16.gmra.mxu0 %v230
    %v1094 = vpop.f32.mrf.mxu0
    %v1095 = vadd.f32 0.0, %v1094
    %v1096 = vpop.f32.mrf.mxu0
    %v1097 = vpop.f32.mrf.mxu0
    %v1098 = vadd.f32 0.0, %v1097
    %v1099 = vpop.f32.mrf.mxu0
    %1100 = vmatprep.mubr.bf16.mxu0 0
    %1101 = vmatmul.mubr.bf16.gmra.mxu0 %v231
    %v1102 = vpop.f32.mrf.mxu0
    %v1103 = vadd.f32 0.0, %v1102
    %v1104 = vpop.f32.mrf.mxu0
    %v1105 = vpop.f32.mrf.mxu0
    %v1106 = vadd.f32 0.0, %v1105
    %v1107 = vpop.f32.mrf.mxu0
    %1108 = vmatprep.mubr.bf16.mxu0 0
    %1109 = vmatmul.mubr.bf16.gmra.mxu0 %v232
    %v1110 = vpop.f32.mrf.mxu0
    %v1111 = vadd.f32 0.0, %v1110
    %v1112 = vpop.f32.mrf.mxu0
    %v1113 = vpop.f32.mrf.mxu0
    %v1114 = vadd.f32 0.0, %v1113
    %v1115 = vpop.f32.mrf.mxu0
    %1116 = vmatprep.mubr.bf16.mxu0 0
    %1117 = vmatmul.mubr.bf16.gmra.mxu0 %v233
    %v1118 = vpop.f32.mrf.mxu0
    %v1119 = vadd.f32 0.0, %v1118
    %v1120 = vpop.f32.mrf.mxu0
    %v1121 = vpop.f32.mrf.mxu0
    %v1122 = vadd.f32 0.0, %v1121
    %v1123 = vpop.f32.mrf.mxu0
    %1124 = vmatprep.mubr.bf16.mxu0 0
    %1125 = vmatmul.mubr.bf16.gmra.mxu0 %v234
    %v1126 = vpop.f32.mrf.mxu0
    %v1127 = vadd.f32 0.0, %v1126
    %v1128 = vpop.f32.mrf.mxu0
    %v1129 = vpop.f32.mrf.mxu0
    %v1130 = vadd.f32 0.0, %v1129
    %v1131 = vpop.f32.mrf.mxu0
    %1132 = vmatprep.mubr.bf16.mxu0 0
    %1133 = vmatmul.mubr.bf16.gmra.mxu0 %v235
    %v1134 = vpop.f32.mrf.mxu0
    %v1135 = vadd.f32 0.0, %v1134
    %v1136 = vpop.f32.mrf.mxu0
    %v1137 = vpop.f32.mrf.mxu0
    %v1138 = vadd.f32 0.0, %v1137
    %v1139 = vpop.f32.mrf.mxu0
    %1140 = vmatprep.mubr.bf16.mxu0 0
    %1141 = vmatmul.mubr.bf16.gmra.mxu0 %v236
    %v1142 = vpop.f32.mrf.mxu0
    %v1143 = vadd.f32 0.0, %v1142
    %v1144 = vpop.f32.mrf.mxu0
    %v1145 = vpop.f32.mrf.mxu0
    %v1146 = vadd.f32 0.0, %v1145
    %v1147 = vpop.f32.mrf.mxu0
    %1148 = vmatprep.mubr.bf16.mxu0 0
    %1149 = vmatmul.mubr.bf16.gmra.mxu0 %v237
    %v1150 = vpop.f32.mrf.mxu0
    %v1151 = vadd.f32 0.0, %v1150
    %v1152 = vpop.f32.mrf.mxu0
    %v1153 = vpop.f32.mrf.mxu0
    %v1154 = vadd.f32 0.0, %v1153
    %v1155 = vpop.f32.mrf.mxu0
    %1156 = vdwg.mxu0
    %v1157 = vpack.c.bf16 %v1098, %v1095
    %v1158 = vpack.c.bf16 %v1106, %v1103
    %v1159 = vpack.c.bf16 %v1114, %v1111
    %v1160 = vpack.c.bf16 %v1122, %v1119
    %v1161 = vpack.c.bf16 %v1130, %v1127
    %v1162 = vpack.c.bf16 %v1138, %v1135
    %v1163 = vpack.c.bf16 %v1146, %v1143
    %v1164 = vpack.c.bf16 %v1154, %v1151
    %v1165 = vld [vmem:[#allocation11] sm:$0xf]
    %v1166 = vld [vmem:[#allocation11 + $0x4] sm:$0xf]
    %v1167 = vld [vmem:[#allocation11 + $0x8] sm:$0xf]
    %v1168 = vld [vmem:[#allocation11 + $0xc] sm:$0xf]
    %v1169 = vld [vmem:[#allocation11 + $0x10] sm:$0xf]
    %v1170 = vld [vmem:[#allocation11 + $0x14] sm:$0xf]
    %v1171 = vld [vmem:[#allocation11 + $0x18] sm:$0xf]
    %v1172 = vld [vmem:[#allocation11 + $0x1c] sm:$0xf]
    %v1173 = vld [vmem:[#allocation11 + $0x20] sm:$0xf]
    %v1174 = vld [vmem:[#allocation11 + $0x24] sm:$0xf]
    %v1175 = vld [vmem:[#allocation11 + $0x28] sm:$0xf]
    %v1176 = vld [vmem:[#allocation11 + $0x2c] sm:$0xf]
    %v1177 = vld [vmem:[#allocation11 + $0x30] sm:$0xf]
    %v1178 = vld [vmem:[#allocation11 + $0x34] sm:$0xf]
    %v1179 = vld [vmem:[#allocation11 + $0x38] sm:$0xf]
    %v1180 = vld [vmem:[#allocation11 + $0x3c] sm:$0xf]
    %v1197 = vunpack.c.l.b16 %v1165
    %v1198 = vunpack.c.l.b16 %v1166
    %v1199 = vunpack.c.l.b16 %v1167
    %v1200 = vunpack.c.l.b16 %v1168
    %v1201 = vunpack.c.l.b16 %v1169
    %v1202 = vunpack.c.l.b16 %v1170
    %v1203 = vunpack.c.l.b16 %v1171
    %v1204 = vunpack.c.l.b16 %v1172
    %v1205 = vunpack.c.l.b16 %v1173
    %v1206 = vunpack.c.l.b16 %v1174
    %v1207 = vunpack.c.l.b16 %v1175
    %v1208 = vunpack.c.l.b16 %v1176
    %v1209 = vunpack.c.l.b16 %v1177
    %v1210 = vunpack.c.l.b16 %v1178
    %v1211 = vunpack.c.l.b16 %v1179
    %v1212 = vunpack.c.l.b16 %v1180
    %v1213 = vpack.c.b16 %v1198, %v1197
    %v1214 = vpack.c.b16 %v1200, %v1199
    %v1215 = vpack.c.b16 %v1202, %v1201
    %v1216 = vpack.c.b16 %v1204, %v1203
    %v1217 = vpack.c.b16 %v1206, %v1205
    %v1218 = vpack.c.b16 %v1208, %v1207
    %v1219 = vpack.c.b16 %v1210, %v1209
    %v1220 = vpack.c.b16 %v1212, %v1211
    %1229 = vmatprep.subr.bf16.mxu0 0
    %1230 = vmatpush1.bf16.msra.mxu0 %v1220
    %1231 = vmatprep.subr.bf16.mxu0 0
    %1232 = vmatpush1.bf16.msra.mxu0 %v1219
    %1233 = vmatprep.subr.bf16.mxu0 0
    %1234 = vmatpush1.bf16.msra.mxu0 %v1218
    %1235 = vmatprep.subr.bf16.mxu0 0
    %1236 = vmatpush1.bf16.msra.mxu0 %v1217
    %1237 = vmatprep.subr.bf16.mxu0 0
    %1238 = vmatpush1.bf16.msra.mxu0 %v1216
    %1239 = vmatprep.subr.bf16.mxu0 0
    %1240 = vmatpush1.bf16.msra.mxu0 %v1215
    %1241 = vmatprep.subr.bf16.mxu0 0
    %1242 = vmatpush1.bf16.msra.mxu0 %v1214
    %1243 = vmatprep.subr.bf16.mxu0 0
    %1244 = vmatpush1.bf16.msra.mxu0 %v1213
    %1245 = vmatprep.subr.bf16.mxu0 0
    %1246 = vmatpush2.bf16.msra.mxu0 0
    %1247 = vmatprep.subr.bf16.mxu0 0
    %1248 = vmatpush2.bf16.msra.mxu0 0
    %1249 = vmatprep.subr.bf16.mxu0 0
    %1250 = vmatpush2.bf16.msra.mxu0 0
    %1251 = vmatprep.subr.bf16.mxu0 0
    %1252 = vmatpush2.bf16.msra.mxu0 0
    %1253 = vmatprep.subr.bf16.mxu0 0
    %1254 = vmatpush2.bf16.msra.mxu0 0
    %1255 = vmatprep.subr.bf16.mxu0 0
    %1256 = vmatpush2.bf16.msra.mxu0 0
    %1257 = vmatprep.subr.bf16.mxu0 0
    %1258 = vmatpush2.bf16.msra.mxu0 0
    %1259 = vmatprep.subr.bf16.mxu0 0
    %1260 = vmatpush2.bf16.msra.mxu0 0
    %1261 = vmatprep.mubr.bf16.mxu0 0
    %1262 = vmatmul.mubr.bf16.gmra.mxu0 %v1157
    %v1263 = vpop.f32.mrf.mxu0
    %v1264 = vadd.f32 0.0, %v1263
    %v1265 = vpop.f32.mrf.mxu0
    %v1266 = vpop.f32.mrf.mxu0
    %v1267 = vadd.f32 0.0, %v1266
    %v1268 = vpop.f32.mrf.mxu0
    %1269 = vmatprep.mubr.bf16.mxu0 0
    %1270 = vmatmul.mubr.bf16.gmra.mxu0 %v1158
    %v1271 = vpop.f32.mrf.mxu0
    %v1272 = vadd.f32 0.0, %v1271
    %v1273 = vpop.f32.mrf.mxu0
    %v1274 = vpop.f32.mrf.mxu0
    %v1275 = vadd.f32 0.0, %v1274
    %v1276 = vpop.f32.mrf.mxu0
    %1277 = vmatprep.mubr.bf16.mxu0 0
    %1278 = vmatmul.mubr.bf16.gmra.mxu0 %v1159
    %v1279 = vpop.f32.mrf.mxu0
    %v1280 = vadd.f32 0.0, %v1279
    %v1281 = vpop.f32.mrf.mxu0
    %v1282 = vpop.f32.mrf.mxu0
    %v1283 = vadd.f32 0.0, %v1282
    %v1284 = vpop.f32.mrf.mxu0
    %1285 = vmatprep.mubr.bf16.mxu0 0
    %1286 = vmatmul.mubr.bf16.gmra.mxu0 %v1160
    %v1287 = vpop.f32.mrf.mxu0
    %v1288 = vadd.f32 0.0, %v1287
    %v1289 = vpop.f32.mrf.mxu0
    %v1290 = vpop.f32.mrf.mxu0
    %v1291 = vadd.f32 0.0, %v1290
    %v1292 = vpop.f32.mrf.mxu0
    %1293 = vmatprep.mubr.bf16.mxu0 0
    %1294 = vmatmul.mubr.bf16.gmra.mxu0 %v1161
    %v1295 = vpop.f32.mrf.mxu0
    %v1296 = vadd.f32 0.0, %v1295
    %v1297 = vpop.f32.mrf.mxu0
    %v1298 = vpop.f32.mrf.mxu0
    %v1299 = vadd.f32 0.0, %v1298
    %v1300 = vpop.f32.mrf.mxu0
    %1301 = vmatprep.mubr.bf16.mxu0 0
    %1302 = vmatmul.mubr.bf16.gmra.mxu0 %v1162
    %v1303 = vpop.f32.mrf.mxu0
    %v1304 = vadd.f32 0.0, %v1303
    %v1305 = vpop.f32.mrf.mxu0
    %v1306 = vpop.f32.mrf.mxu0
    %v1307 = vadd.f32 0.0, %v1306
    %v1308 = vpop.f32.mrf.mxu0
    %1309 = vmatprep.mubr.bf16.mxu0 0
    %1310 = vmatmul.mubr.bf16.gmra.mxu0 %v1163
    %v1311 = vpop.f32.mrf.mxu0
    %v1312 = vadd.f32 0.0, %v1311
    %v1313 = vpop.f32.mrf.mxu0
    %v1314 = vpop.f32.mrf.mxu0
    %v1315 = vadd.f32 0.0, %v1314
    %v1316 = vpop.f32.mrf.mxu0
    %1317 = vmatprep.mubr.bf16.mxu0 0
    %1318 = vmatmul.mubr.bf16.gmra.mxu0 %v1164
    %v1319 = vpop.f32.mrf.mxu0
    %v1320 = vadd.f32 0.0, %v1319
    %v1321 = vpop.f32.mrf.mxu0
    %v1322 = vpop.f32.mrf.mxu0
    %v1323 = vadd.f32 0.0, %v1322
    %v1324 = vpop.f32.mrf.mxu0
    %1325 = vdwg.mxu0
    %v1326 = vld [vmem:[#allocation10] sm:$0xf]
    %v1327 = vld [vmem:[#allocation10 + $0x4] sm:$0xf]
    %v1328 = vld [vmem:[#allocation10 + $0x8] sm:$0xf]
    %v1329 = vld [vmem:[#allocation10 + $0xc] sm:$0xf]
    %v1330 = vld [vmem:[#allocation10 + $0x10] sm:$0xf]
    %v1331 = vld [vmem:[#allocation10 + $0x14] sm:$0xf]
    %v1332 = vld [vmem:[#allocation10 + $0x18] sm:$0xf]
    %v1333 = vld [vmem:[#allocation10 + $0x1c] sm:$0xf]
    %v1334 = vld [vmem:[#allocation10 + $0x20] sm:$0xf]
    %v1335 = vld [vmem:[#allocation10 + $0x24] sm:$0xf]
    %v1336 = vld [vmem:[#allocation10 + $0x28] sm:$0xf]
    %v1337 = vld [vmem:[#allocation10 + $0x2c] sm:$0xf]
    %v1338 = vld [vmem:[#allocation10 + $0x30] sm:$0xf]
    %v1339 = vld [vmem:[#allocation10 + $0x34] sm:$0xf]
    %v1340 = vld [vmem:[#allocation10 + $0x38] sm:$0xf]
    %v1341 = vld [vmem:[#allocation10 + $0x3c] sm:$0xf]
    %v1358 = vunpack.c.l.b16 %v1326
    %v1359 = vunpack.c.l.b16 %v1327
    %v1360 = vunpack.c.l.b16 %v1328
    %v1361 = vunpack.c.l.b16 %v1329
    %v1362 = vunpack.c.l.b16 %v1330
    %v1363 = vunpack.c.l.b16 %v1331
    %v1364 = vunpack.c.l.b16 %v1332
    %v1365 = vunpack.c.l.b16 %v1333
    %v1366 = vunpack.c.l.b16 %v1334
    %v1367 = vunpack.c.l.b16 %v1335
    %v1368 = vunpack.c.l.b16 %v1336
    %v1369 = vunpack.c.l.b16 %v1337
    %v1370 = vunpack.c.l.b16 %v1338
    %v1371 = vunpack.c.l.b16 %v1339
    %v1372 = vunpack.c.l.b16 %v1340
    %v1373 = vunpack.c.l.b16 %v1341
    %v1374 = vpack.c.b16 %v1359, %v1358
    %v1375 = vpack.c.b16 %v1361, %v1360
    %v1376 = vpack.c.b16 %v1363, %v1362
    %v1377 = vpack.c.b16 %v1365, %v1364
    %v1378 = vpack.c.b16 %v1367, %v1366
    %v1379 = vpack.c.b16 %v1369, %v1368
    %v1380 = vpack.c.b16 %v1371, %v1370
    %v1381 = vpack.c.b16 %v1373, %v1372
    %1390 = vmatprep.subr.bf16.mxu0 0
    %1391 = vmatpush1.bf16.msra.mxu0 %v1381
    %1392 = vmatprep.subr.bf16.mxu0 0
    %1393 = vmatpush1.bf16.msra.mxu0 %v1380
    %1394 = vmatprep.subr.bf16.mxu0 0
    %1395 = vmatpush1.bf16.msra.mxu0 %v1379
    %1396 = vmatprep.subr.bf16.mxu0 0
    %1397 = vmatpush1.bf16.msra.mxu0 %v1378
    %1398 = vmatprep.subr.bf16.mxu0 0
    %1399 = vmatpush1.bf16.msra.mxu0 %v1377
    %1400 = vmatprep.subr.bf16.mxu0 0
    %1401 = vmatpush1.bf16.msra.mxu0 %v1376
    %1402 = vmatprep.subr.bf16.mxu0 0
    %1403 = vmatpush1.bf16.msra.mxu0 %v1375
    %1404 = vmatprep.subr.bf16.mxu0 0
    %1405 = vmatpush1.bf16.msra.mxu0 %v1374
    %1406 = vmatprep.subr.bf16.mxu0 0
    %1407 = vmatpush2.bf16.msra.mxu0 0
    %1408 = vmatprep.subr.bf16.mxu0 0
    %1409 = vmatpush2.bf16.msra.mxu0 0
    %1410 = vmatprep.subr.bf16.mxu0 0
    %1411 = vmatpush2.bf16.msra.mxu0 0
    %1412 = vmatprep.subr.bf16.mxu0 0
    %1413 = vmatpush2.bf16.msra.mxu0 0
    %1414 = vmatprep.subr.bf16.mxu0 0
    %1415 = vmatpush2.bf16.msra.mxu0 0
    %1416 = vmatprep.subr.bf16.mxu0 0
    %1417 = vmatpush2.bf16.msra.mxu0 0
    %1418 = vmatprep.subr.bf16.mxu0 0
    %1419 = vmatpush2.bf16.msra.mxu0 0
    %1420 = vmatprep.subr.bf16.mxu0 0
    %1421 = vmatpush2.bf16.msra.mxu0 0
    %1422 = vmatprep.mubr.bf16.mxu0 0
    %1423 = vmatmul.mubr.bf16.gmra.mxu0 %v1052
    %v1424 = vpop.f32.mrf.mxu0
    %v1425 = vadd.f32 %v1264, %v1424
    %v1426 = vpop.f32.mrf.mxu0
    %v1427 = vpop.f32.mrf.mxu0
    %v1428 = vadd.f32 %v1267, %v1427
    %v1429 = vpop.f32.mrf.mxu0
    %1430 = vmatprep.mubr.bf16.mxu0 0
    %1431 = vmatmul.mubr.bf16.gmra.mxu0 %v1053
    %v1432 = vpop.f32.mrf.mxu0
    %v1433 = vadd.f32 %v1272, %v1432
    %v1434 = vpop.f32.mrf.mxu0
    %v1435 = vpop.f32.mrf.mxu0
    %v1436 = vadd.f32 %v1275, %v1435
    %v1437 = vpop.f32.mrf.mxu0
    %1438 = vmatprep.mubr.bf16.mxu0 0
    %1439 = vmatmul.mubr.bf16.gmra.mxu0 %v1054
    %v1440 = vpop.f32.mrf.mxu0
    %v1441 = vadd.f32 %v1280, %v1440
    %v1442 = vpop.f32.mrf.mxu0
    %v1443 = vpop.f32.mrf.mxu0
    %v1444 = vadd.f32 %v1283, %v1443
    %v1445 = vpop.f32.mrf.mxu0
    %1446 = vmatprep.mubr.bf16.mxu0 0
    %1447 = vmatmul.mubr.bf16.gmra.mxu0 %v1055
    %v1448 = vpop.f32.mrf.mxu0
    %v1449 = vadd.f32 %v1288, %v1448
    %v1450 = vpop.f32.mrf.mxu0
    %v1451 = vpop.f32.mrf.mxu0
    %v1452 = vadd.f32 %v1291, %v1451
    %v1453 = vpop.f32.mrf.mxu0
    %1454 = vmatprep.mubr.bf16.mxu0 0
    %1455 = vmatmul.mubr.bf16.gmra.mxu0 %v1056
    %v1456 = vpop.f32.mrf.mxu0
    %v1457 = vadd.f32 %v1296, %v1456
    %v1458 = vpop.f32.mrf.mxu0
    %v1459 = vpop.f32.mrf.mxu0
    %v1460 = vadd.f32 %v1299, %v1459
    %v1461 = vpop.f32.mrf.mxu0
    %1462 = vmatprep.mubr.bf16.mxu0 0
    %1463 = vmatmul.mubr.bf16.gmra.mxu0 %v1057
    %v1464 = vpop.f32.mrf.mxu0
    %v1465 = vadd.f32 %v1304, %v1464
    %v1466 = vpop.f32.mrf.mxu0
    %v1467 = vpop.f32.mrf.mxu0
    %v1468 = vadd.f32 %v1307, %v1467
    %v1469 = vpop.f32.mrf.mxu0
    %1470 = vmatprep.mubr.bf16.mxu0 0
    %1471 = vmatmul.mubr.bf16.gmra.mxu0 %v1058
    %v1472 = vpop.f32.mrf.mxu0
    %v1473 = vadd.f32 %v1312, %v1472
    %v1474 = vpop.f32.mrf.mxu0
    %v1475 = vpop.f32.mrf.mxu0
    %v1476 = vadd.f32 %v1315, %v1475
    %v1477 = vpop.f32.mrf.mxu0
    %1478 = vmatprep.mubr.bf16.mxu0 0
    %1479 = vmatmul.mubr.bf16.gmra.mxu0 %v1059
    %v1480 = vpop.f32.mrf.mxu0
    %v1481 = vadd.f32 %v1320, %v1480
    %v1482 = vpop.f32.mrf.mxu0
    %v1483 = vpop.f32.mrf.mxu0
    %v1484 = vadd.f32 %v1323, %v1483
    %v1485 = vpop.f32.mrf.mxu0
    %1486 = vdwg.mxu0
    %v1487 = vld [vmem:[%s9] sm:$0x1]
    %v1489 = vlaneseq
    %v1490 = vshrl.u32 %v1489, 7
    %v1491 = vsub.s32 0, %v1490
    %v1492 = vrot.slane %v1487, %v1491
    %v1494 = vadd.f32 %v1425, %v1492
    %v1495 = vadd.f32 %v1428, %v1492
    %v1496 = vadd.f32 %v1433, %v1492
    %v1497 = vadd.f32 %v1436, %v1492
    %v1498 = vadd.f32 %v1441, %v1492
    %v1499 = vadd.f32 %v1444, %v1492
    %v1500 = vadd.f32 %v1449, %v1492
    %v1501 = vadd.f32 %v1452, %v1492
    %v1502 = vadd.f32 %v1457, %v1492
    %v1503 = vadd.f32 %v1460, %v1492
    %v1504 = vadd.f32 %v1465, %v1492
    %v1505 = vadd.f32 %v1468, %v1492
    %v1506 = vadd.f32 %v1473, %v1492
    %v1507 = vadd.f32 %v1476, %v1492
    %v1508 = vadd.f32 %v1481, %v1492
    %v1509 = vadd.f32 %v1484, %v1492
    %1510 = vmatprep.subr.mxu0 0.0
    %1511 = vmatpush1.msra.mxu0 %v1509
    %1512 = vmatprep.subr.mxu0 0.0
    %1513 = vmatpush1.msra.mxu0 %v1508
    %1514 = vmatprep.subr.mxu0 0.0
    %1515 = vmatpush1.msra.mxu0 %v1507
    %1516 = vmatprep.subr.mxu0 0.0
    %1517 = vmatpush1.msra.mxu0 %v1506
    %1518 = vmatprep.subr.mxu0 0.0
    %1519 = vmatpush1.msra.mxu0 %v1505
    %1520 = vmatprep.subr.mxu0 0.0
    %1521 = vmatpush1.msra.mxu0 %v1504
    %1522 = vmatprep.subr.mxu0 0.0
    %1523 = vmatpush1.msra.mxu0 %v1503
    %1524 = vmatprep.subr.mxu0 0.0
    %1525 = vmatpush1.msra.mxu0 %v1502
    %1526 = vmatprep.subr.mxu0 0.0
    %1527 = vmatpush1.msra.mxu0 %v1501
    %1528 = vmatprep.subr.mxu0 0.0
    %1529 = vmatpush1.msra.mxu0 %v1500
    %1530 = vmatprep.subr.mxu0 0.0
    %1531 = vmatpush1.msra.mxu0 %v1499
    %1532 = vmatprep.subr.mxu0 0.0
    %1533 = vmatpush1.msra.mxu0 %v1498
    %1534 = vmatprep.subr.mxu0 0.0
    %1535 = vmatpush1.msra.mxu0 %v1497
    %1536 = vmatprep.subr.mxu0 0.0
    %1537 = vmatpush1.msra.mxu0 %v1496
    %1538 = vmatprep.subr.mxu0 0.0
    %1539 = vmatpush1.msra.mxu0 %v1495
    %1540 = vmatprep.subr.mxu0 0.0
    %1541 = vmatpush1.msra.mxu0 %v1494
    %1542 = vmatprep.subr.mxu0 0.0
    %1543 = vmatpush2.msra.mxu0 0.0
    %1544 = vmatprep.subr.mxu0 0.0
    %1545 = vmatpush2.msra.mxu0 0.0
    %1546 = vmatprep.subr.mxu0 0.0
    %1547 = vmatpush2.msra.mxu0 0.0
    %1548 = vmatprep.subr.mxu0 0.0
    %1549 = vmatpush2.msra.mxu0 0.0
    %1550 = vmatprep.subr.mxu0 0.0
    %1551 = vmatpush2.msra.mxu0 0.0
    %1552 = vmatprep.subr.mxu0 0.0
    %1553 = vmatpush2.msra.mxu0 0.0
    %1554 = vmatprep.subr.mxu0 0.0
    %1555 = vmatpush2.msra.mxu0 0.0
    %1556 = vmatprep.subr.mxu0 0.0
    %1557 = vmatpush2.msra.mxu0 0.0
    %1558 = vmatprep.subr.mxu0 0.0
    %1559 = vmatpush2.msra.mxu0 0.0
    %1560 = vmatprep.subr.mxu0 0.0
    %1561 = vmatpush2.msra.mxu0 0.0
    %1562 = vmatprep.subr.mxu0 0.0
    %1563 = vmatpush2.msra.mxu0 0.0
    %1564 = vmatprep.subr.mxu0 0.0
    %1565 = vmatpush2.msra.mxu0 0.0
    %1566 = vmatprep.subr.mxu0 0.0
    %1567 = vmatpush2.msra.mxu0 0.0
    %1568 = vmatprep.subr.mxu0 0.0
    %1569 = vmatpush2.msra.mxu0 0.0
    %1570 = vmatprep.subr.mxu0 0.0
    %1571 = vmatpush2.msra.mxu0 0.0
    %1572 = vmatprep.subr.mxu0 0.0
    %1573 = vmatpush2.msra.mxu0 0.0
    %1574 = vmatprep.mubr.f32.mxu0 0.0
    %1575 = vmatmul.mubr.f32.gmra.mxu0 %v165
    %v1576 = vpop.f32.mrf.mxu0
    %v1577 = vadd.f32 0.0, %v1576
    %v1578 = vpop.f32.mrf.mxu0
    %1579 = vdwg.mxu0
    %v1580 = vmul.f32 %v1494, %v1494
    %v1581 = vmul.f32 %v1495, %v1495
    %v1582 = vmul.f32 %v1496, %v1496
    %v1583 = vmul.f32 %v1497, %v1497
    %v1584 = vmul.f32 %v1498, %v1498
    %v1585 = vmul.f32 %v1499, %v1499
    %v1586 = vmul.f32 %v1500, %v1500
    %v1587 = vmul.f32 %v1501, %v1501
    %v1588 = vmul.f32 %v1502, %v1502
    %v1589 = vmul.f32 %v1503, %v1503
    %v1590 = vmul.f32 %v1504, %v1504
    %v1591 = vmul.f32 %v1505, %v1505
    %v1592 = vmul.f32 %v1506, %v1506
    %v1593 = vmul.f32 %v1507, %v1507
    %v1594 = vmul.f32 %v1508, %v1508
    %v1595 = vmul.f32 %v1509, %v1509
    %1596 = vmatprep.subr.mxu0 0.0
    %1597 = vmatpush1.msra.mxu0 %v1595
    %1598 = vmatprep.subr.mxu0 0.0
    %1599 = vmatpush1.msra.mxu0 %v1594
    %1600 = vmatprep.subr.mxu0 0.0
    %1601 = vmatpush1.msra.mxu0 %v1593
    %1602 = vmatprep.subr.mxu0 0.0
    %1603 = vmatpush1.msra.mxu0 %v1592
    %1604 = vmatprep.subr.mxu0 0.0
    %1605 = vmatpush1.msra.mxu0 %v1591
    %1606 = vmatprep.subr.mxu0 0.0
    %1607 = vmatpush1.msra.mxu0 %v1590
    %1608 = vmatprep.subr.mxu0 0.0
    %1609 = vmatpush1.msra.mxu0 %v1589
    %1610 = vmatprep.subr.mxu0 0.0
    %1611 = vmatpush1.msra.mxu0 %v1588
    %1612 = vmatprep.subr.mxu0 0.0
    %1613 = vmatpush1.msra.mxu0 %v1587
    %1614 = vmatprep.subr.mxu0 0.0
    %1615 = vmatpush1.msra.mxu0 %v1586
    %1616 = vmatprep.subr.mxu0 0.0
    %1617 = vmatpush1.msra.mxu0 %v1585
    %1618 = vmatprep.subr.mxu0 0.0
    %1619 = vmatpush1.msra.mxu0 %v1584
    %1620 = vmatprep.subr.mxu0 0.0
    %1621 = vmatpush1.msra.mxu0 %v1583
    %1622 = vmatprep.subr.mxu0 0.0
    %1623 = vmatpush1.msra.mxu0 %v1582
    %1624 = vmatprep.subr.mxu0 0.0
    %1625 = vmatpush1.msra.mxu0 %v1581
    %1626 = vmatprep.subr.mxu0 0.0
    %1627 = vmatpush1.msra.mxu0 %v1580
    %1628 = vmatprep.subr.mxu0 0.0
    %1629 = vmatpush2.msra.mxu0 0.0
    %1630 = vmatprep.subr.mxu0 0.0
    %1631 = vmatpush2.msra.mxu0 0.0
    %1632 = vmatprep.subr.mxu0 0.0
    %1633 = vmatpush2.msra.mxu0 0.0
    %1634 = vmatprep.subr.mxu0 0.0
    %1635 = vmatpush2.msra.mxu0 0.0
    %1636 = vmatprep.subr.mxu0 0.0
    %1637 = vmatpush2.msra.mxu0 0.0
    %1638 = vmatprep.subr.mxu0 0.0
    %1639 = vmatpush2.msra.mxu0 0.0
    %1640 = vmatprep.subr.mxu0 0.0
    %1641 = vmatpush2.msra.mxu0 0.0
    %1642 = vmatprep.subr.mxu0 0.0
    %1643 = vmatpush2.msra.mxu0 0.0
    %1644 = vmatprep.subr.mxu0 0.0
    %1645 = vmatpush2.msra.mxu0 0.0
    %1646 = vmatprep.subr.mxu0 0.0
    %1647 = vmatpush2.msra.mxu0 0.0
    %1648 = vmatprep.subr.mxu0 0.0
    %1649 = vmatpush2.msra.mxu0 0.0
    %1650 = vmatprep.subr.mxu0 0.0
    %1651 = vmatpush2.msra.mxu0 0.0
    %1652 = vmatprep.subr.mxu0 0.0
    %1653 = vmatpush2.msra.mxu0 0.0
    %1654 = vmatprep.subr.mxu0 0.0
    %1655 = vmatpush2.msra.mxu0 0.0
    %1656 = vmatprep.subr.mxu0 0.0
    %1657 = vmatpush2.msra.mxu0 0.0
    %1658 = vmatprep.subr.mxu0 0.0
    %1659 = vmatpush2.msra.mxu0 0.0
    %1660 = vmatprep.mubr.f32.mxu0 0.0
    %1661 = vmatmul.mubr.f32.gmra.mxu0 %v165
    %v1662 = vpop.f32.mrf.mxu0
    %v1663 = vadd.f32 0.0, %v1662
    %v1664 = vpop.f32.mrf.mxu0
    %1665 = vdwg.mxu0
    %v1666 = vmul.f32 %v1577, 0.0625
    %v1667 = vmul.f32 %v1663, 0.0625
    %v1668 = vmul.f32 %v1666, %v1666
    %v1669 = vsub.f32 %v1667, %v1668
    %v1670 = vmax.f32 %v1669, 0.0
    %v1671 = vld [vmem:[%s10] sm:$0x1]
    %v1672 = vadd.f32 %v1670, 1e-05
    %v1673 = vrsqrt.pop %v1672
    %v1674 = vmul.f32 %v1671, %v1673
    %v1675 = vld [vmem:[%s11] sm:$0x1]
    %v1676 = vmul.f32 %v1666, %v1674
    %v1677 = vsub.f32 %v1675, %v1676
    %v1679 = vlaneseq
    %v1680 = vshrl.u32 %v1679, 7
    %v1681 = vsub.s32 0, %v1680
    %v1682 = vrot.slane %v1674, %v1681
    %v1684 = vmul.f32 %v1494, %v1682
    %v1685 = vmul.f32 %v1495, %v1682
    %v1686 = vmul.f32 %v1496, %v1682
    %v1687 = vmul.f32 %v1497, %v1682
    %v1688 = vmul.f32 %v1498, %v1682
    %v1689 = vmul.f32 %v1499, %v1682
    %v1690 = vmul.f32 %v1500, %v1682
    %v1691 = vmul.f32 %v1501, %v1682
    %v1692 = vmul.f32 %v1502, %v1682
    %v1693 = vmul.f32 %v1503, %v1682
    %v1694 = vmul.f32 %v1504, %v1682
    %v1695 = vmul.f32 %v1505, %v1682
    %v1696 = vmul.f32 %v1506, %v1682
    %v1697 = vmul.f32 %v1507, %v1682
    %v1698 = vmul.f32 %v1508, %v1682
    %v1699 = vmul.f32 %v1509, %v1682
    %v1701 = vlaneseq
    %v1702 = vshrl.u32 %v1701, 7
    %v1703 = vsub.s32 0, %v1702
    %v1704 = vrot.slane %v1677, %v1703
    %v1706 = vadd.f32 %v1684, %v1704
    %v1707 = vadd.f32 %v1685, %v1704
    %v1708 = vadd.f32 %v1686, %v1704
    %v1709 = vadd.f32 %v1687, %v1704
    %v1710 = vadd.f32 %v1688, %v1704
    %v1711 = vadd.f32 %v1689, %v1704
    %v1712 = vadd.f32 %v1690, %v1704
    %v1713 = vadd.f32 %v1691, %v1704
    %v1714 = vadd.f32 %v1692, %v1704
    %v1715 = vadd.f32 %v1693, %v1704
    %v1716 = vadd.f32 %v1694, %v1704
    %v1717 = vadd.f32 %v1695, %v1704
    %v1718 = vadd.f32 %v1696, %v1704
    %v1719 = vadd.f32 %v1697, %v1704
    %v1720 = vadd.f32 %v1698, %v1704
    %v1721 = vadd.f32 %v1699, %v1704
    %vm1722 = vcmp.gt.f32.partialorder %v1706, 0.0
    %vm1723 = vcmp.gt.f32.partialorder %v1707, 0.0
    %vm1724 = vcmp.gt.f32.partialorder %v1708, 0.0
    %vm1725 = vcmp.gt.f32.partialorder %v1709, 0.0
    %vm1726 = vcmp.gt.f32.partialorder %v1710, 0.0
    %vm1727 = vcmp.gt.f32.partialorder %v1711, 0.0
    %vm1728 = vcmp.gt.f32.partialorder %v1712, 0.0
    %vm1729 = vcmp.gt.f32.partialorder %v1713, 0.0
    %vm1730 = vcmp.gt.f32.partialorder %v1714, 0.0
    %vm1731 = vcmp.gt.f32.partialorder %v1715, 0.0
    %vm1732 = vcmp.gt.f32.partialorder %v1716, 0.0
    %vm1733 = vcmp.gt.f32.partialorder %v1717, 0.0
    %vm1734 = vcmp.gt.f32.partialorder %v1718, 0.0
    %vm1735 = vcmp.gt.f32.partialorder %v1719, 0.0
    %vm1736 = vcmp.gt.f32.partialorder %v1720, 0.0
    %vm1737 = vcmp.gt.f32.partialorder %v1721, 0.0
    %v1738 = vmin.f32 %v1706, 0.0
    %v1739 = vmin.f32 %v1707, 0.0
    %v1740 = vmin.f32 %v1708, 0.0
    %v1741 = vmin.f32 %v1709, 0.0
    %v1742 = vmin.f32 %v1710, 0.0
    %v1743 = vmin.f32 %v1711, 0.0
    %v1744 = vmin.f32 %v1712, 0.0
    %v1745 = vmin.f32 %v1713, 0.0
    %v1746 = vmin.f32 %v1714, 0.0
    %v1747 = vmin.f32 %v1715, 0.0
    %v1748 = vmin.f32 %v1716, 0.0
    %v1749 = vmin.f32 %v1717, 0.0
    %v1750 = vmin.f32 %v1718, 0.0
    %v1751 = vmin.f32 %v1719, 0.0
    %v1752 = vmin.f32 %v1720, 0.0
    %v1753 = vmin.f32 %v1721, 0.0
    %v1754 = vmul.f32 %v1738, 1.442695
    %v1755 = vpow.pop %v1754
    %v1756 = vmul.f32 %v1739, 1.442695
    %v1757 = vpow.pop %v1756
    %v1758 = vmul.f32 %v1740, 1.442695
    %v1759 = vpow.pop %v1758
    %v1760 = vmul.f32 %v1741, 1.442695
    %v1761 = vpow.pop %v1760
    %v1762 = vmul.f32 %v1742, 1.442695
    %v1763 = vpow.pop %v1762
    %v1764 = vmul.f32 %v1743, 1.442695
    %v1765 = vpow.pop %v1764
    %v1766 = vmul.f32 %v1744, 1.442695
    %v1767 = vpow.pop %v1766
    %v1768 = vmul.f32 %v1745, 1.442695
    %v1769 = vpow.pop %v1768
    %v1770 = vmul.f32 %v1746, 1.442695
    %v1771 = vpow.pop %v1770
    %v1772 = vmul.f32 %v1747, 1.442695
    %v1773 = vpow.pop %v1772
    %v1774 = vmul.f32 %v1748, 1.442695
    %v1775 = vpow.pop %v1774
    %v1776 = vmul.f32 %v1749, 1.442695
    %v1777 = vpow.pop %v1776
    %v1778 = vmul.f32 %v1750, 1.442695
    %v1779 = vpow.pop %v1778
    %v1780 = vmul.f32 %v1751, 1.442695
    %v1781 = vpow.pop %v1780
    %v1782 = vmul.f32 %v1752, 1.442695
    %v1783 = vpow.pop %v1782
    %v1784 = vmul.f32 %v1753, 1.442695
    %v1785 = vpow.pop %v1784
    %v1786 = vsub.f32 %v1755, 1.0
    %v1787 = vsub.f32 %v1757, 1.0
    %v1788 = vsub.f32 %v1759, 1.0
    %v1789 = vsub.f32 %v1761, 1.0
    %v1790 = vsub.f32 %v1763, 1.0
    %v1791 = vsub.f32 %v1765, 1.0
    %v1792 = vsub.f32 %v1767, 1.0
    %v1793 = vsub.f32 %v1769, 1.0
    %v1794 = vsub.f32 %v1771, 1.0
    %v1795 = vsub.f32 %v1773, 1.0
    %v1796 = vsub.f32 %v1775, 1.0
    %v1797 = vsub.f32 %v1777, 1.0
    %v1798 = vsub.f32 %v1779, 1.0
    %v1799 = vsub.f32 %v1781, 1.0
    %v1800 = vsub.f32 %v1783, 1.0
    %v1801 = vsub.f32 %v1785, 1.0
    %v1802 = vsel %vm1722, %v1706, %v1786
    %v1803 = vsel %vm1723, %v1707, %v1787
    %v1804 = vsel %vm1724, %v1708, %v1788
    %v1805 = vsel %vm1725, %v1709, %v1789
    %v1806 = vsel %vm1726, %v1710, %v1790
    %v1807 = vsel %vm1727, %v1711, %v1791
    %v1808 = vsel %vm1728, %v1712, %v1792
    %v1809 = vsel %vm1729, %v1713, %v1793
    %v1810 = vsel %vm1730, %v1714, %v1794
    %v1811 = vsel %vm1731, %v1715, %v1795
    %v1812 = vsel %vm1732, %v1716, %v1796
    %v1813 = vsel %vm1733, %v1717, %v1797
    %v1814 = vsel %vm1734, %v1718, %v1798
    %v1815 = vsel %vm1735, %v1719, %v1799
    %v1816 = vsel %vm1736, %v1720, %v1800
    %v1817 = vsel %vm1737, %v1721, %v1801
    %v1818 = vpack.c.bf16 %v1803, %v1802
    %v1819 = vpack.c.bf16 %v1805, %v1804
    %v1820 = vpack.c.bf16 %v1807, %v1806
    %v1821 = vpack.c.bf16 %v1809, %v1808
    %v1822 = vpack.c.bf16 %v1811, %v1810
    %v1823 = vpack.c.bf16 %v1813, %v1812
    %v1824 = vpack.c.bf16 %v1815, %v1814
    %v1825 = vpack.c.bf16 %v1817, %v1816
    %1826 = vmatprep.subr.bf16.mxu0 0
    %1827 = vmatpush1.bf16.msra.mxu0 %v1825
    %1828 = vmatprep.subr.bf16.mxu0 0
    %1829 = vmatpush1.bf16.msra.mxu0 %v1824
    %1830 = vmatprep.subr.bf16.mxu0 0
    %1831 = vmatpush1.bf16.msra.mxu0 %v1823
    %1832 = vmatprep.subr.bf16.mxu0 0
    %1833 = vmatpush1.bf16.msra.mxu0 %v1822
    %1834 = vmatprep.subr.bf16.mxu0 0
    %1835 = vmatpush1.bf16.msra.mxu0 %v1821
    %1836 = vmatprep.subr.bf16.mxu0 0
    %1837 = vmatpush1.bf16.msra.mxu0 %v1820
    %1838 = vmatprep.subr.bf16.mxu0 0
    %1839 = vmatpush1.bf16.msra.mxu0 %v1819
    %1840 = vmatprep.subr.bf16.mxu0 0
    %1841 = vmatpush1.bf16.msra.mxu0 %v1818
    %1842 = vmatprep.subr.bf16.mxu0 0
    %1843 = vmatpush2.bf16.msra.mxu0 0
    %1844 = vmatprep.subr.bf16.mxu0 0
    %1845 = vmatpush2.bf16.msra.mxu0 0
    %1846 = vmatprep.subr.bf16.mxu0 0
    %1847 = vmatpush2.bf16.msra.mxu0 0
    %1848 = vmatprep.subr.bf16.mxu0 0
    %1849 = vmatpush2.bf16.msra.mxu0 0
    %1850 = vmatprep.subr.bf16.mxu0 0
    %1851 = vmatpush2.bf16.msra.mxu0 0
    %1852 = vmatprep.subr.bf16.mxu0 0
    %1853 = vmatpush2.bf16.msra.mxu0 0
    %1854 = vmatprep.subr.bf16.mxu0 0
    %1855 = vmatpush2.bf16.msra.mxu0 0
    %1856 = vmatprep.subr.bf16.mxu0 0
    %1857 = vmatpush2.bf16.msra.mxu0 0
    %1858 = vmatprep.mubr.bf16.mxu0 0
    %1859 = vmatmul.mubr.bf16.gmra.mxu0 %v230
    %v1860 = vpop.f32.mrf.mxu0
    %v1861 = vadd.f32 0.0, %v1860
    %v1862 = vpop.f32.mrf.mxu0
    %v1863 = vpop.f32.mrf.mxu0
    %v1864 = vadd.f32 0.0, %v1863
    %v1865 = vpop.f32.mrf.mxu0
    %1866 = vmatprep.mubr.bf16.mxu0 0
    %1867 = vmatmul.mubr.bf16.gmra.mxu0 %v231
    %v1868 = vpop.f32.mrf.mxu0
    %v1869 = vadd.f32 0.0, %v1868
    %v1870 = vpop.f32.mrf.mxu0
    %v1871 = vpop.f32.mrf.mxu0
    %v1872 = vadd.f32 0.0, %v1871
    %v1873 = vpop.f32.mrf.mxu0
    %1874 = vmatprep.mubr.bf16.mxu0 0
    %1875 = vmatmul.mubr.bf16.gmra.mxu0 %v232
    %v1876 = vpop.f32.mrf.mxu0
    %v1877 = vadd.f32 0.0, %v1876
    %v1878 = vpop.f32.mrf.mxu0
    %v1879 = vpop.f32.mrf.mxu0
    %v1880 = vadd.f32 0.0, %v1879
    %v1881 = vpop.f32.mrf.mxu0
    %1882 = vmatprep.mubr.bf16.mxu0 0
    %1883 = vmatmul.mubr.bf16.gmra.mxu0 %v233
    %v1884 = vpop.f32.mrf.mxu0
    %v1885 = vadd.f32 0.0, %v1884
    %v1886 = vpop.f32.mrf.mxu0
    %v1887 = vpop.f32.mrf.mxu0
    %v1888 = vadd.f32 0.0, %v1887
    %v1889 = vpop.f32.mrf.mxu0
    %1890 = vmatprep.mubr.bf16.mxu0 0
    %1891 = vmatmul.mubr.bf16.gmra.mxu0 %v234
    %v1892 = vpop.f32.mrf.mxu0
    %v1893 = vadd.f32 0.0, %v1892
    %v1894 = vpop.f32.mrf.mxu0
    %v1895 = vpop.f32.mrf.mxu0
    %v1896 = vadd.f32 0.0, %v1895
    %v1897 = vpop.f32.mrf.mxu0
    %1898 = vmatprep.mubr.bf16.mxu0 0
    %1899 = vmatmul.mubr.bf16.gmra.mxu0 %v235
    %v1900 = vpop.f32.mrf.mxu0
    %v1901 = vadd.f32 0.0, %v1900
    %v1902 = vpop.f32.mrf.mxu0
    %v1903 = vpop.f32.mrf.mxu0
    %v1904 = vadd.f32 0.0, %v1903
    %v1905 = vpop.f32.mrf.mxu0
    %1906 = vmatprep.mubr.bf16.mxu0 0
    %1907 = vmatmul.mubr.bf16.gmra.mxu0 %v236
    %v1908 = vpop.f32.mrf.mxu0
    %v1909 = vadd.f32 0.0, %v1908
    %v1910 = vpop.f32.mrf.mxu0
    %v1911 = vpop.f32.mrf.mxu0
    %v1912 = vadd.f32 0.0, %v1911
    %v1913 = vpop.f32.mrf.mxu0
    %1914 = vmatprep.mubr.bf16.mxu0 0
    %1915 = vmatmul.mubr.bf16.gmra.mxu0 %v237
    %v1916 = vpop.f32.mrf.mxu0
    %v1917 = vadd.f32 0.0, %v1916
    %v1918 = vpop.f32.mrf.mxu0
    %v1919 = vpop.f32.mrf.mxu0
    %v1920 = vadd.f32 0.0, %v1919
    %v1921 = vpop.f32.mrf.mxu0
    %1922 = vdwg.mxu0
    %v1923 = vpack.c.bf16 %v1864, %v1861
    %v1924 = vpack.c.bf16 %v1872, %v1869
    %v1925 = vpack.c.bf16 %v1880, %v1877
    %v1926 = vpack.c.bf16 %v1888, %v1885
    %v1927 = vpack.c.bf16 %v1896, %v1893
    %v1928 = vpack.c.bf16 %v1904, %v1901
    %v1929 = vpack.c.bf16 %v1912, %v1909
    %v1930 = vpack.c.bf16 %v1920, %v1917
    %v1931 = vld [vmem:[#allocation14] sm:$0xf]
    %v1932 = vld [vmem:[#allocation14 + $0x4] sm:$0xf]
    %v1933 = vld [vmem:[#allocation14 + $0x8] sm:$0xf]
    %v1934 = vld [vmem:[#allocation14 + $0xc] sm:$0xf]
    %v1935 = vld [vmem:[#allocation14 + $0x10] sm:$0xf]
    %v1936 = vld [vmem:[#allocation14 + $0x14] sm:$0xf]
    %v1937 = vld [vmem:[#allocation14 + $0x18] sm:$0xf]
    %v1938 = vld [vmem:[#allocation14 + $0x1c] sm:$0xf]
    %v1939 = vld [vmem:[#allocation14 + $0x20] sm:$0xf]
    %v1940 = vld [vmem:[#allocation14 + $0x24] sm:$0xf]
    %v1941 = vld [vmem:[#allocation14 + $0x28] sm:$0xf]
    %v1942 = vld [vmem:[#allocation14 + $0x2c] sm:$0xf]
    %v1943 = vld [vmem:[#allocation14 + $0x30] sm:$0xf]
    %v1944 = vld [vmem:[#allocation14 + $0x34] sm:$0xf]
    %v1945 = vld [vmem:[#allocation14 + $0x38] sm:$0xf]
    %v1946 = vld [vmem:[#allocation14 + $0x3c] sm:$0xf]
    %v1963 = vunpack.c.l.b16 %v1931
    %v1964 = vunpack.c.l.b16 %v1932
    %v1965 = vunpack.c.l.b16 %v1933
    %v1966 = vunpack.c.l.b16 %v1934
    %v1967 = vunpack.c.l.b16 %v1935
    %v1968 = vunpack.c.l.b16 %v1936
    %v1969 = vunpack.c.l.b16 %v1937
    %v1970 = vunpack.c.l.b16 %v1938
    %v1971 = vunpack.c.l.b16 %v1939
    %v1972 = vunpack.c.l.b16 %v1940
    %v1973 = vunpack.c.l.b16 %v1941
    %v1974 = vunpack.c.l.b16 %v1942
    %v1975 = vunpack.c.l.b16 %v1943
    %v1976 = vunpack.c.l.b16 %v1944
    %v1977 = vunpack.c.l.b16 %v1945
    %v1978 = vunpack.c.l.b16 %v1946
    %v1979 = vpack.c.b16 %v1964, %v1963
    %v1980 = vpack.c.b16 %v1966, %v1965
    %v1981 = vpack.c.b16 %v1968, %v1967
    %v1982 = vpack.c.b16 %v1970, %v1969
    %v1983 = vpack.c.b16 %v1972, %v1971
    %v1984 = vpack.c.b16 %v1974, %v1973
    %v1985 = vpack.c.b16 %v1976, %v1975
    %v1986 = vpack.c.b16 %v1978, %v1977
    %1995 = vmatprep.subr.bf16.mxu0 0
    %1996 = vmatpush1.bf16.msra.mxu0 %v1986
    %1997 = vmatprep.subr.bf16.mxu0 0
    %1998 = vmatpush1.bf16.msra.mxu0 %v1985
    %1999 = vmatprep.subr.bf16.mxu0 0
    %2000 = vmatpush1.bf16.msra.mxu0 %v1984
    %2001 = vmatprep.subr.bf16.mxu0 0
    %2002 = vmatpush1.bf16.msra.mxu0 %v1983
    %2003 = vmatprep.subr.bf16.mxu0 0
    %2004 = vmatpush1.bf16.msra.mxu0 %v1982
    %2005 = vmatprep.subr.bf16.mxu0 0
    %2006 = vmatpush1.bf16.msra.mxu0 %v1981
    %2007 = vmatprep.subr.bf16.mxu0 0
    %2008 = vmatpush1.bf16.msra.mxu0 %v1980
    %2009 = vmatprep.subr.bf16.mxu0 0
    %2010 = vmatpush1.bf16.msra.mxu0 %v1979
    %2011 = vmatprep.subr.bf16.mxu0 0
    %2012 = vmatpush2.bf16.msra.mxu0 0
    %2013 = vmatprep.subr.bf16.mxu0 0
    %2014 = vmatpush2.bf16.msra.mxu0 0
    %2015 = vmatprep.subr.bf16.mxu0 0
    %2016 = vmatpush2.bf16.msra.mxu0 0
    %2017 = vmatprep.subr.bf16.mxu0 0
    %2018 = vmatpush2.bf16.msra.mxu0 0
    %2019 = vmatprep.subr.bf16.mxu0 0
    %2020 = vmatpush2.bf16.msra.mxu0 0
    %2021 = vmatprep.subr.bf16.mxu0 0
    %2022 = vmatpush2.bf16.msra.mxu0 0
    %2023 = vmatprep.subr.bf16.mxu0 0
    %2024 = vmatpush2.bf16.msra.mxu0 0
    %2025 = vmatprep.subr.bf16.mxu0 0
    %2026 = vmatpush2.bf16.msra.mxu0 0
    %2027 = vmatprep.mubr.bf16.mxu0 0
    %2028 = vmatmul.mubr.bf16.gmra.mxu0 %v1923
    %v2029 = vpop.f32.mrf.mxu0
    %v2030 = vadd.f32 0.0, %v2029
    %v2031 = vpop.f32.mrf.mxu0
    %v2032 = vpop.f32.mrf.mxu0
    %v2033 = vadd.f32 0.0, %v2032
    %v2034 = vpop.f32.mrf.mxu0
    %2035 = vmatprep.mubr.bf16.mxu0 0
    %2036 = vmatmul.mubr.bf16.gmra.mxu0 %v1924
    %v2037 = vpop.f32.mrf.mxu0
    %v2038 = vadd.f32 0.0, %v2037
    %v2039 = vpop.f32.mrf.mxu0
    %v2040 = vpop.f32.mrf.mxu0
    %v2041 = vadd.f32 0.0, %v2040
    %v2042 = vpop.f32.mrf.mxu0
    %2043 = vmatprep.mubr.bf16.mxu0 0
    %2044 = vmatmul.mubr.bf16.gmra.mxu0 %v1925
    %v2045 = vpop.f32.mrf.mxu0
    %v2046 = vadd.f32 0.0, %v2045
    %v2047 = vpop.f32.mrf.mxu0
    %v2048 = vpop.f32.mrf.mxu0
    %v2049 = vadd.f32 0.0, %v2048
    %v2050 = vpop.f32.mrf.mxu0
    %2051 = vmatprep.mubr.bf16.mxu0 0
    %2052 = vmatmul.mubr.bf16.gmra.mxu0 %v1926
    %v2053 = vpop.f32.mrf.mxu0
    %v2054 = vadd.f32 0.0, %v2053
    %v2055 = vpop.f32.mrf.mxu0
    %v2056 = vpop.f32.mrf.mxu0
    %v2057 = vadd.f32 0.0, %v2056
    %v2058 = vpop.f32.mrf.mxu0
    %2059 = vmatprep.mubr.bf16.mxu0 0
    %2060 = vmatmul.mubr.bf16.gmra.mxu0 %v1927
    %v2061 = vpop.f32.mrf.mxu0
    %v2062 = vadd.f32 0.0, %v2061
    %v2063 = vpop.f32.mrf.mxu0
    %v2064 = vpop.f32.mrf.mxu0
    %v2065 = vadd.f32 0.0, %v2064
    %v2066 = vpop.f32.mrf.mxu0
    %2067 = vmatprep.mubr.bf16.mxu0 0
    %2068 = vmatmul.mubr.bf16.gmra.mxu0 %v1928
    %v2069 = vpop.f32.mrf.mxu0
    %v2070 = vadd.f32 0.0, %v2069
    %v2071 = vpop.f32.mrf.mxu0
    %v2072 = vpop.f32.mrf.mxu0
    %v2073 = vadd.f32 0.0, %v2072
    %v2074 = vpop.f32.mrf.mxu0
    %2075 = vmatprep.mubr.bf16.mxu0 0
    %2076 = vmatmul.mubr.bf16.gmra.mxu0 %v1929
    %v2077 = vpop.f32.mrf.mxu0
    %v2078 = vadd.f32 0.0, %v2077
    %v2079 = vpop.f32.mrf.mxu0
    %v2080 = vpop.f32.mrf.mxu0
    %v2081 = vadd.f32 0.0, %v2080
    %v2082 = vpop.f32.mrf.mxu0
    %2083 = vmatprep.mubr.bf16.mxu0 0
    %2084 = vmatmul.mubr.bf16.gmra.mxu0 %v1930
    %v2085 = vpop.f32.mrf.mxu0
    %v2086 = vadd.f32 0.0, %v2085
    %v2087 = vpop.f32.mrf.mxu0
    %v2088 = vpop.f32.mrf.mxu0
    %v2089 = vadd.f32 0.0, %v2088
    %v2090 = vpop.f32.mrf.mxu0
    %2091 = vdwg.mxu0
    %v2092 = vld [vmem:[#allocation13] sm:$0xf]
    %v2093 = vld [vmem:[#allocation13 + $0x4] sm:$0xf]
    %v2094 = vld [vmem:[#allocation13 + $0x8] sm:$0xf]
    %v2095 = vld [vmem:[#allocation13 + $0xc] sm:$0xf]
    %v2096 = vld [vmem:[#allocation13 + $0x10] sm:$0xf]
    %v2097 = vld [vmem:[#allocation13 + $0x14] sm:$0xf]
    %v2098 = vld [vmem:[#allocation13 + $0x18] sm:$0xf]
    %v2099 = vld [vmem:[#allocation13 + $0x1c] sm:$0xf]
    %v2100 = vld [vmem:[#allocation13 + $0x20] sm:$0xf]
    %v2101 = vld [vmem:[#allocation13 + $0x24] sm:$0xf]
    %v2102 = vld [vmem:[#allocation13 + $0x28] sm:$0xf]
    %v2103 = vld [vmem:[#allocation13 + $0x2c] sm:$0xf]
    %v2104 = vld [vmem:[#allocation13 + $0x30] sm:$0xf]
    %v2105 = vld [vmem:[#allocation13 + $0x34] sm:$0xf]
    %v2106 = vld [vmem:[#allocation13 + $0x38] sm:$0xf]
    %v2107 = vld [vmem:[#allocation13 + $0x3c] sm:$0xf]
    %v2124 = vunpack.c.l.b16 %v2092
    %v2125 = vunpack.c.l.b16 %v2093
    %v2126 = vunpack.c.l.b16 %v2094
    %v2127 = vunpack.c.l.b16 %v2095
    %v2128 = vunpack.c.l.b16 %v2096
    %v2129 = vunpack.c.l.b16 %v2097
    %v2130 = vunpack.c.l.b16 %v2098
    %v2131 = vunpack.c.l.b16 %v2099
    %v2132 = vunpack.c.l.b16 %v2100
    %v2133 = vunpack.c.l.b16 %v2101
    %v2134 = vunpack.c.l.b16 %v2102
    %v2135 = vunpack.c.l.b16 %v2103
    %v2136 = vunpack.c.l.b16 %v2104
    %v2137 = vunpack.c.l.b16 %v2105
    %v2138 = vunpack.c.l.b16 %v2106
    %v2139 = vunpack.c.l.b16 %v2107
    %v2140 = vpack.c.b16 %v2125, %v2124
    %v2141 = vpack.c.b16 %v2127, %v2126
    %v2142 = vpack.c.b16 %v2129, %v2128
    %v2143 = vpack.c.b16 %v2131, %v2130
    %v2144 = vpack.c.b16 %v2133, %v2132
    %v2145 = vpack.c.b16 %v2135, %v2134
    %v2146 = vpack.c.b16 %v2137, %v2136
    %v2147 = vpack.c.b16 %v2139, %v2138
    %2156 = vmatprep.subr.bf16.mxu0 0
    %2157 = vmatpush1.bf16.msra.mxu0 %v2147
    %2158 = vmatprep.subr.bf16.mxu0 0
    %2159 = vmatpush1.bf16.msra.mxu0 %v2146
    %2160 = vmatprep.subr.bf16.mxu0 0
    %2161 = vmatpush1.bf16.msra.mxu0 %v2145
    %2162 = vmatprep.subr.bf16.mxu0 0
    %2163 = vmatpush1.bf16.msra.mxu0 %v2144
    %2164 = vmatprep.subr.bf16.mxu0 0
    %2165 = vmatpush1.bf16.msra.mxu0 %v2143
    %2166 = vmatprep.subr.bf16.mxu0 0
    %2167 = vmatpush1.bf16.msra.mxu0 %v2142
    %2168 = vmatprep.subr.bf16.mxu0 0
    %2169 = vmatpush1.bf16.msra.mxu0 %v2141
    %2170 = vmatprep.subr.bf16.mxu0 0
    %2171 = vmatpush1.bf16.msra.mxu0 %v2140
    %2172 = vmatprep.subr.bf16.mxu0 0
    %2173 = vmatpush2.bf16.msra.mxu0 0
    %2174 = vmatprep.subr.bf16.mxu0 0
    %2175 = vmatpush2.bf16.msra.mxu0 0
    %2176 = vmatprep.subr.bf16.mxu0 0
    %2177 = vmatpush2.bf16.msra.mxu0 0
    %2178 = vmatprep.subr.bf16.mxu0 0
    %2179 = vmatpush2.bf16.msra.mxu0 0
    %2180 = vmatprep.subr.bf16.mxu0 0
    %2181 = vmatpush2.bf16.msra.mxu0 0
    %2182 = vmatprep.subr.bf16.mxu0 0
    %2183 = vmatpush2.bf16.msra.mxu0 0
    %2184 = vmatprep.subr.bf16.mxu0 0
    %2185 = vmatpush2.bf16.msra.mxu0 0
    %2186 = vmatprep.subr.bf16.mxu0 0
    %2187 = vmatpush2.bf16.msra.mxu0 0
    %2188 = vmatprep.mubr.bf16.mxu0 0
    %2189 = vmatmul.mubr.bf16.gmra.mxu0 %v1818
    %v2190 = vpop.f32.mrf.mxu0
    %v2191 = vadd.f32 %v2030, %v2190
    %v2192 = vpop.f32.mrf.mxu0
    %v2193 = vpop.f32.mrf.mxu0
    %v2194 = vadd.f32 %v2033, %v2193
    %v2195 = vpop.f32.mrf.mxu0
    %2196 = vmatprep.mubr.bf16.mxu0 0
    %2197 = vmatmul.mubr.bf16.gmra.mxu0 %v1819
    %v2198 = vpop.f32.mrf.mxu0
    %v2199 = vadd.f32 %v2038, %v2198
    %v2200 = vpop.f32.mrf.mxu0
    %v2201 = vpop.f32.mrf.mxu0
    %v2202 = vadd.f32 %v2041, %v2201
    %v2203 = vpop.f32.mrf.mxu0
    %2204 = vmatprep.mubr.bf16.mxu0 0
    %2205 = vmatmul.mubr.bf16.gmra.mxu0 %v1820
    %v2206 = vpop.f32.mrf.mxu0
    %v2207 = vadd.f32 %v2046, %v2206
    %v2208 = vpop.f32.mrf.mxu0
    %v2209 = vpop.f32.mrf.mxu0
    %v2210 = vadd.f32 %v2049, %v2209
    %v2211 = vpop.f32.mrf.mxu0
    %2212 = vmatprep.mubr.bf16.mxu0 0
    %2213 = vmatmul.mubr.bf16.gmra.mxu0 %v1821
    %v2214 = vpop.f32.mrf.mxu0
    %v2215 = vadd.f32 %v2054, %v2214
    %v2216 = vpop.f32.mrf.mxu0
    %v2217 = vpop.f32.mrf.mxu0
    %v2218 = vadd.f32 %v2057, %v2217
    %v2219 = vpop.f32.mrf.mxu0
    %2220 = vmatprep.mubr.bf16.mxu0 0
    %2221 = vmatmul.mubr.bf16.gmra.mxu0 %v1822
    %v2222 = vpop.f32.mrf.mxu0
    %v2223 = vadd.f32 %v2062, %v2222
    %v2224 = vpop.f32.mrf.mxu0
    %v2225 = vpop.f32.mrf.mxu0
    %v2226 = vadd.f32 %v2065, %v2225
    %v2227 = vpop.f32.mrf.mxu0
    %2228 = vmatprep.mubr.bf16.mxu0 0
    %2229 = vmatmul.mubr.bf16.gmra.mxu0 %v1823
    %v2230 = vpop.f32.mrf.mxu0
    %v2231 = vadd.f32 %v2070, %v2230
    %v2232 = vpop.f32.mrf.mxu0
    %v2233 = vpop.f32.mrf.mxu0
    %v2234 = vadd.f32 %v2073, %v2233
    %v2235 = vpop.f32.mrf.mxu0
    %2236 = vmatprep.mubr.bf16.mxu0 0
    %2237 = vmatmul.mubr.bf16.gmra.mxu0 %v1824
    %v2238 = vpop.f32.mrf.mxu0
    %v2239 = vadd.f32 %v2078, %v2238
    %v2240 = vpop.f32.mrf.mxu0
    %v2241 = vpop.f32.mrf.mxu0
    %v2242 = vadd.f32 %v2081, %v2241
    %v2243 = vpop.f32.mrf.mxu0
    %2244 = vmatprep.mubr.bf16.mxu0 0
    %2245 = vmatmul.mubr.bf16.gmra.mxu0 %v1825
    %v2246 = vpop.f32.mrf.mxu0
    %v2247 = vadd.f32 %v2086, %v2246
    %v2248 = vpop.f32.mrf.mxu0
    %v2249 = vpop.f32.mrf.mxu0
    %v2250 = vadd.f32 %v2089, %v2249
    %v2251 = vpop.f32.mrf.mxu0
    %2252 = vdwg.mxu0
    %v2253 = vld [vmem:[%s14] sm:$0x1]
    %v2255 = vlaneseq
    %v2256 = vshrl.u32 %v2255, 7
    %v2257 = vsub.s32 0, %v2256
    %v2258 = vrot.slane %v2253, %v2257
    %v2260 = vadd.f32 %v2191, %v2258
    %v2261 = vadd.f32 %v2194, %v2258
    %v2262 = vadd.f32 %v2199, %v2258
    %v2263 = vadd.f32 %v2202, %v2258
    %v2264 = vadd.f32 %v2207, %v2258
    %v2265 = vadd.f32 %v2210, %v2258
    %v2266 = vadd.f32 %v2215, %v2258
    %v2267 = vadd.f32 %v2218, %v2258
    %v2268 = vadd.f32 %v2223, %v2258
    %v2269 = vadd.f32 %v2226, %v2258
    %v2270 = vadd.f32 %v2231, %v2258
    %v2271 = vadd.f32 %v2234, %v2258
    %v2272 = vadd.f32 %v2239, %v2258
    %v2273 = vadd.f32 %v2242, %v2258
    %v2274 = vadd.f32 %v2247, %v2258
    %v2275 = vadd.f32 %v2250, %v2258
    %2276 = vst [vmem:[#allocation16] sm:$0xff] %v2260
    %2277 = vst [vmem:[#allocation16 + $0x8] sm:$0xff] %v2261
    %2278 = vst [vmem:[#allocation16 + $0x10] sm:$0xff] %v2262
    %2279 = vst [vmem:[#allocation16 + $0x18] sm:$0xff] %v2263
    %2280 = vst [vmem:[#allocation16 + $0x20] sm:$0xff] %v2264
    %2281 = vst [vmem:[#allocation16 + $0x28] sm:$0xff] %v2265
    %2282 = vst [vmem:[#allocation16 + $0x30] sm:$0xff] %v2266
    %2283 = vst [vmem:[#allocation16 + $0x38] sm:$0xff] %v2267
    %2284 = vst [vmem:[#allocation16 + $0x40] sm:$0xff] %v2268
    %2285 = vst [vmem:[#allocation16 + $0x48] sm:$0xff] %v2269
    %2286 = vst [vmem:[#allocation16 + $0x50] sm:$0xff] %v2270
    %2287 = vst [vmem:[#allocation16 + $0x58] sm:$0xff] %v2271
    %2288 = vst [vmem:[#allocation16 + $0x60] sm:$0xff] %v2272
    %2289 = vst [vmem:[#allocation16 + $0x68] sm:$0xff] %v2273
    %2290 = vst [vmem:[#allocation16 + $0x70] sm:$0xff] %v2274
    %2291 = vst [vmem:[#allocation16 + $0x78] sm:$0xff] %v2275
    // Predicated region
    $region94: #{tpu_custom_call.1} parent=1 // pred_check
      _
    $region95: #{tpu_custom_call.1} parent=1 // pred_check_branch
      %2293 = sbr.rel (0) target = $region97
    $region96: #{tpu_custom_call.1} parent=1 // pred_region
      %s2295 = ssub.s32 2048, 2048
      %2296 = vsyncadd [#allocation4], %s2295
      %s2297 = sshll.u32 [#allocation16], 4
      %s2298 = int_to_ptr.vmem [resolvable:$true] %s2297
      %2303 = dma.vmem_to_hbm [thread:$0]  %s2298, 2048, %s15, [#allocation4], 128, 128, 8
    $region97: #{tpu_custom_call.1} parent=1 // pred_fallthru
      _
    // Predicated region
    $region98: #{tpu_custom_call.1} parent=1 // pred_check
      _
    $region99: #{tpu_custom_call.1} parent=1 // pred_check_branch
      %2305 = sbr.rel (0) target = $region101
    $region100: #{tpu_custom_call.1} parent=1 // pred_region
      %2306 = dma.done [#allocation4], 2048
    $region101: #{tpu_custom_call.1} parent=1 // pred_fallthru
      _
    %2307 = vsyncpa [#allocation3], 1
    %2308 = vsyncpa [#allocation6], 1
    %2309 = vsyncpa [#allocation9], 1
    %2310 = vsyncpa [#allocation12], 1
    %2311 = vsyncpa [#allocation15], 1
    %2312 = vsyncpa [#allocation4], 1

</llo_original>
